<compile_context>
chip_gen: v6e
topology: v6e:2x2x1
jax: 0.10.0
libtpu: 0.0.40
codegen_flags: <defaults>
</compile_context>

<pallas_src>
import functools

import jax
import jax.numpy as jnp
from jax import lax
from jax.experimental import pallas as pl
from jax.experimental.pallas import tpu as pltpu


def _ppeg_fused_kernel(x_ref, w_ref, b_ref, out_ref, xpad_ref, *, H, W, SH):
    """One (batch, channel-tile) block per grid step.

    x_ref    : (1, 1+H*W, Ct)  tokens for this batch / channel tile (cls token at row 0)
    w_ref    : (7, 7, Ct)      fused effective depthwise stencil (7x7 + 5x5 + 3x3 + identity)
    b_ref    : (1, 1, Ct)      fused bias (b7 + b5 + b3)
    out_ref  : (1, 1+H*W, Ct)  output tokens (cls token at row 0)
    xpad_ref : (H+6, W+6, Ct)  VMEM scratch: zero-bordered padded feature map
    """
    Ct = out_ref.shape[-1]
    Wp = W + 6
    dt = xpad_ref.dtype

    # cls token passes straight through (no wrapper-side concat pass).
    out_ref[0, 0:1, :] = x_ref[0, 0:1, :]

    # --- Padding folded into the kernel: re-zero the 3-wide border (cheap; keeps every grid
    #     step self-contained) and stage the H*W feature token rows into the interior.
    #     Row-wise copies avoid any in-kernel reshape (robust for arbitrary W).
    xpad_ref[0:3, :, :] = jnp.zeros((3, Wp, Ct), dt)
    xpad_ref[3 + H:, :, :] = jnp.zeros((3, Wp, Ct), dt)
    xpad_ref[3:3 + H, 0:3, :] = jnp.zeros((H, 3, Ct), dt)
    xpad_ref[3:3 + H, 3 + W:, :] = jnp.zeros((H, 3, Ct), dt)
    for h in range(H):                                           # static unroll, traced once
        xpad_ref[3 + h, 3:3 + W, :] = x_ref[0, 1 + h * W:1 + (h + 1) * W, :]

    # --- Hoist the 49 stencil lane-vectors and the bias out of the strip loop (JAX does not
    #     CSE these; re-loading them per strip would add redundant loads/broadcasts). ---
    w_all = w_ref[...].astype(jnp.float32)                       # (7, 7, Ct)
    bias = b_ref[0, 0:1, :].astype(jnp.float32)                  # (1, Ct)

    n_strips = H // SH

    def strip_body(s, carry):
        h0 = s * SH
        # f32 accumulator for one SH-row strip: small enough to stay vreg-resident, so the
        # 49 taps are pure VALU work with no accumulator VMEM round-trips.
        acc = jnp.broadcast_to(bias, (SH, W, Ct))
        for kh in range(7):
            for kw in range(7):
                xs = xpad_ref[pl.ds(h0 + kh, SH), kw:kw + W, :].astype(jnp.float32)
                acc = acc + xs * w_all[kh, kw]
        o = acc.astype(out_ref.dtype)
        # Write the strip directly into the (N, Ct) token layout at offset 1 + row*W.
        for r in range(SH):                                      # static unroll
            out_ref[0, pl.ds(1 + (h0 + r) * W, W), :] = o[r]
        return carry

    if n_strips == 1:
        strip_body(0, 0)                 # fully static offsets when one strip covers H
    else:
        lax.fori_loop(0, n_strips, strip_body, 0)


def ppeg_forward(x, H, W, w7, b7, w5, b5, w3, b3):
    """x: (B, 1+H*W, C).  Weights wK: (K, K, C), biases bK: (C,).  Returns (B, 1+H*W, C)."""
    B, N, C = x.shape
    assert N == 1 + H * W
    Hp, Wp = H + 6, W + 6

    # --- Fuse proj(7x7,pad3) + identity + proj1(5x5,pad2) + proj2(3x3,pad1) into one
    #     effective 7x7 depthwise stencil (all share the same centre) and one bias. ---
    w_eff = w7.astype(jnp.float32)
    w_eff = w_eff.at[1:6, 1:6, :].add(w5.astype(jnp.float32))
    w_eff = w_eff.at[2:5, 2:5, :].add(w3.astype(jnp.float32))
    w_eff = w_eff.at[3, 3, :].add(1.0)                           # "+ cnn_feat" identity term
    b_eff = (b7 + b5 + b3).astype(jnp.float32).reshape(1, 1, C)

    # --- Channel tiling (halo-free for depthwise conv): lane-dense 128-channel tiles when
    #     C allows (production C=512), otherwise the full channel dim.
    # TODO(synk): lane-dense packing (fold W or B into the lane axis) for C < 128 / odd C.
    Ct = 128 if C % 128 == 0 else C
    n_ct = C // Ct

    # --- Strip height: per-strip f32 accumulator ~<= 32 KiB (8 vregs) so it stays
    #     register-resident; SH must divide H so the strip loop needs no remainder path. ---
    acc_budget = 8192                                  # f32 elements per strip accumulator
    sh_cap = max(1, min(H, acc_budget // max(1, W * Ct)))
    SH = max(d for d in range(1, sh_cap + 1) if H % d == 0)

    # --- Explicit VMEM budget for the chosen block (true working set + small headroom). ---
    itemsize = jnp.dtype(x.dtype).itemsize
    need = (2 * N * Ct * itemsize              # double-buffered input token block
            + 2 * N * Ct * itemsize            # double-buffered output token block
            + 2 * (49 + 1) * Ct * 4            # double-buffered fused stencil + bias (f32)
            + Hp * Wp * Ct * itemsize          # zero-padded staging scratch
            + 4 * SH * W * Ct * 4)             # strip accumulator / tap temporaries
    vmem_limit = int(need + (4 << 20))
    # TODO(synk): add an H-strip grid axis (with halo indexing) if H*W grows large enough
    # that a single (N, Ct) token block no longer fits comfortably in VMEM (v7x: 64 MiB/TC).

    kernel = functools.partial(_ppeg_fused_kernel, H=H, W=W, SH=SH)

    return pl.pallas_call(
        kernel,
        out_shape=jax.ShapeDtypeStruct((B, N, C), x.dtype),
        grid=(B, n_ct),
        in_specs=[
            pl.BlockSpec((1, N, Ct), lambda b, c: (b, 0, c)),
            pl.BlockSpec((7, 7, Ct), lambda b, c: (0, 0, c)),
            pl.BlockSpec((1, 1, Ct), lambda b, c: (0, 0, c)),
        ],
        out_specs=pl.BlockSpec((1, N, Ct), lambda b, c: (b, 0, c)),
        scratch_shapes=[pltpu.VMEM((Hp, Wp, Ct), x.dtype)],
        compiler_params=pltpu.CompilerParams(
            dimension_semantics=("parallel", "parallel"),
            vmem_limit_bytes=vmem_limit),
    )(x, w_eff, b_eff)


def _reference_ppeg(x, H, W, w7, b7, w5, b5, w3, b3):
    """Pure-JAX (lax.conv) reference matching the PyTorch module."""
    B, N, C = x.shape
    cls_tok = x[:, :1, :]
    feat = jnp.transpose(x[:, 1:, :], (0, 2, 1)).reshape(B, C, H, W)   # NCHW

    def dwconv(inp, w_kkc, bias, pad):
        # w_kkc: (k, k, C) -> PyTorch depthwise layout (C, 1, k, k)
        w = jnp.transpose(w_kkc, (2, 0, 1))[:, None, :, :]
        y = lax.conv_general_dilated(
            inp, w, window_strides=(1, 1), padding=[(pad, pad), (pad, pad)],
            dimension_numbers=("NCHW", "OIHW", "NCHW"), feature_group_count=C)
        return y + bias[None, :, None, None]

    out = dwconv(feat, w7, b7, 3) + feat + dwconv(feat, w5, b5, 2) + dwconv(feat, w3, b3, 1)
    out = jnp.transpose(out.reshape(B, C, H * W), (0, 2, 1))
    return jnp.concatenate([cls_tok, out], axis=1)


if __name__ == "__main__":
    key = jax.random.PRNGKey(0)
    B, C, H, W = 2, 128, 8, 8          # small stand-in for dim=512; lane-dense channel tile
    N = 1 + H * W

    k_x, k7w, k7b, k5w, k5b, k3w, k3b = jax.random.split(key, 7)
    x = jax.random.normal(k_x, (B, N, C), dtype=jnp.float32)

    # deterministic synthetic parameters (depthwise weights stored as (k, k, C))
    w7 = 0.05 * jax.random.normal(k7w, (7, 7, C), dtype=jnp.float32)
    b7 = 0.01 * jax.random.normal(k7b, (C,), dtype=jnp.float32)
    w5 = 0.05 * jax.random.normal(k5w, (5, 5, C), dtype=jnp.float32)
    b5 = 0.01 * jax.random.normal(k5b, (C,), dtype=jnp.float32)
    w3 = 0.05 * jax.random.normal(k3w, (3, 3, C), dtype=jnp.float32)
    b3 = 0.01 * jax.random.normal(k3b, (C,), dtype=jnp.float32)

    out = ppeg_forward(x, H, W, w7, b7, w5, b5, w3, b3)
    out = jax.block_until_ready(out)

    ref = _reference_ppeg(x, H, W, w7, b7, w5, b5, w3, b3)
    assert out.shape == (B, N, C)
    assert jnp.allclose(out, ref, atol=1e-4, rtol=1e-4), "mismatch vs lax.conv reference"

    print("KERNEL_OK")
</pallas_src>

<mosaic_0001>
module attributes {stable_mosaic.version = 11 : i64} {
  func.func @_ppeg_fused_kernel(%arg0: i32, %arg1: i32, %arg2: memref<1x65x128xf32, #tpu.memory_space<vmem>>, %arg3: memref<7x7x128xf32, #tpu.memory_space<vmem>>, %arg4: memref<1x1x128xf32, #tpu.memory_space<vmem>>, %arg5: memref<1x65x128xf32, #tpu.memory_space<vmem>>, %arg6: memref<14x14x128xf32, #tpu.memory_space<vmem>>) attributes {dimension_semantics = [#tpu.dimension_semantics<parallel>, #tpu.dimension_semantics<parallel>], iteration_bounds = array<i64: 2, 1>, scalar_prefetch = 0 : i64, scratch_operands = 1 : i64, tpu.core_type = #tpu.core_type<tc>, window_params = [{transform_indices = @transform_0, window_bounds = array<i64: 1, 65, 128>}, {transform_indices = @transform_1, window_bounds = array<i64: 7, 7, 128>}, {transform_indices = @transform_2, window_bounds = array<i64: 1, 1, 128>}, {transform_indices = @transform_3, window_bounds = array<i64: 1, 65, 128>}]} {
    %c0 = arith.constant 0 : index
    %c0_0 = arith.constant 0 : index
    %c0_1 = arith.constant 0 : index
    %0 = vector.load %arg2[%c0, %c0_0, %c0_1] : memref<1x65x128xf32, #tpu.memory_space<vmem>>, vector<1x1x128xf32>
    %1 = vector.shape_cast %0 : vector<1x1x128xf32> to vector<1x128xf32>
    %c0_2 = arith.constant 0 : index
    %c0_3 = arith.constant 0 : index
    %c0_4 = arith.constant 0 : index
    %2 = vector.load %arg5[%c0_2, %c0_3, %c0_4] : memref<1x65x128xf32, #tpu.memory_space<vmem>>, vector<1x1x128xf32>
    %3 = vector.shape_cast %2 : vector<1x1x128xf32> to vector<1x128xf32>
    %4 = vector.shape_cast %1 : vector<1x128xf32> to vector<1x1x128xf32>
    tpu.vector_store %arg5[%c0_2, %c0_3, %c0_4], %4 {strides = array<i32>} : memref<1x65x128xf32, #tpu.memory_space<vmem>>, vector<1x1x128xf32>,
    %cst = arith.constant 0.000000e+00 : f32
    %5 = vector.broadcast %cst : f32 to vector<3x14x128xf32>
    %c0_5 = arith.constant 0 : index
    %c0_6 = arith.constant 0 : index
    %c0_7 = arith.constant 0 : index
    %6 = vector.load %arg6[%c0_5, %c0_6, %c0_7] : memref<14x14x128xf32, #tpu.memory_space<vmem>>, vector<3x14x128xf32>
    tpu.vector_store %arg6[%c0_5, %c0_6, %c0_7], %5 {strides = array<i32>} : memref<14x14x128xf32, #tpu.memory_space<vmem>>, vector<3x14x128xf32>,
    %cst_8 = arith.constant 0.000000e+00 : f32
    %7 = vector.broadcast %cst_8 : f32 to vector<3x14x128xf32>
    %c11 = arith.constant 11 : index
    %c0_9 = arith.constant 0 : index
    %c0_10 = arith.constant 0 : index
    %8 = vector.load %arg6[%c11, %c0_9, %c0_10] : memref<14x14x128xf32, #tpu.memory_space<vmem>>, vector<3x14x128xf32>
    tpu.vector_store %arg6[%c11, %c0_9, %c0_10], %7 {strides = array<i32>} : memref<14x14x128xf32, #tpu.memory_space<vmem>>, vector<3x14x128xf32>,
    %cst_11 = arith.constant 0.000000e+00 : f32
    %9 = vector.broadcast %cst_11 : f32 to vector<8x3x128xf32>
    %c3 = arith.constant 3 : index
    %c0_12 = arith.constant 0 : index
    %c0_13 = arith.constant 0 : index
    %10 = vector.load %arg6[%c3, %c0_12, %c0_13] : memref<14x14x128xf32, #tpu.memory_space<vmem>>, vector<8x3x128xf32>
    tpu.vector_store %arg6[%c3, %c0_12, %c0_13], %9 {strides = array<i32>} : memref<14x14x128xf32, #tpu.memory_space<vmem>>, vector<8x3x128xf32>,
    %cst_14 = arith.constant 0.000000e+00 : f32
    %11 = vector.broadcast %cst_14 : f32 to vector<8x3x128xf32>
    %c3_15 = arith.constant 3 : index
    %c11_16 = arith.constant 11 : index
    %c0_17 = arith.constant 0 : index
    %12 = vector.load %arg6[%c3_15, %c11_16, %c0_17] : memref<14x14x128xf32, #tpu.memory_space<vmem>>, vector<8x3x128xf32>
    tpu.vector_store %arg6[%c3_15, %c11_16, %c0_17], %11 {strides = array<i32>} : memref<14x14x128xf32, #tpu.memory_space<vmem>>, vector<8x3x128xf32>,
    %c0_18 = arith.constant 0 : index
    %c1 = arith.constant 1 : index
    %c0_19 = arith.constant 0 : index
    %13 = vector.load %arg2[%c0_18, %c1, %c0_19] : memref<1x65x128xf32, #tpu.memory_space<vmem>>, vector<1x8x128xf32>
    %14 = vector.shape_cast %13 : vector<1x8x128xf32> to vector<8x128xf32>
    %c3_20 = arith.constant 3 : index
    %c3_21 = arith.constant 3 : index
    %c0_22 = arith.constant 0 : index
    %15 = vector.load %arg6[%c3_20, %c3_21, %c0_22] : memref<14x14x128xf32, #tpu.memory_space<vmem>>, vector<1x8x128xf32>
    %16 = vector.shape_cast %15 : vector<1x8x128xf32> to vector<8x128xf32>
    %17 = vector.shape_cast %14 : vector<8x128xf32> to vector<1x8x128xf32>
    tpu.vector_store %arg6[%c3_20, %c3_21, %c0_22], %17 {strides = array<i32>} : memref<14x14x128xf32, #tpu.memory_space<vmem>>, vector<1x8x128xf32>,
    %c0_23 = arith.constant 0 : index
    %c9 = arith.constant 9 : index
    %c0_24 = arith.constant 0 : index
    %18 = vector.load %arg2[%c0_23, %c9, %c0_24] : memref<1x65x128xf32, #tpu.memory_space<vmem>>, vector<1x8x128xf32>
    %19 = vector.shape_cast %18 : vector<1x8x128xf32> to vector<8x128xf32>
    %c4 = arith.constant 4 : index
    %c3_25 = arith.constant 3 : index
    %c0_26 = arith.constant 0 : index
    %20 = vector.load %arg6[%c4, %c3_25, %c0_26] : memref<14x14x128xf32, #tpu.memory_space<vmem>>, vector<1x8x128xf32>
    %21 = vector.shape_cast %20 : vector<1x8x128xf32> to vector<8x128xf32>
    %22 = vector.shape_cast %19 : vector<8x128xf32> to vector<1x8x128xf32>
    tpu.vector_store %arg6[%c4, %c3_25, %c0_26], %22 {strides = array<i32>} : memref<14x14x128xf32, #tpu.memory_space<vmem>>, vector<1x8x128xf32>,
    %c0_27 = arith.constant 0 : index
    %c17 = arith.constant 17 : index
    %c0_28 = arith.constant 0 : index
    %23 = vector.load %arg2[%c0_27, %c17, %c0_28] : memref<1x65x128xf32, #tpu.memory_space<vmem>>, vector<1x8x128xf32>
    %24 = vector.shape_cast %23 : vector<1x8x128xf32> to vector<8x128xf32>
    %c5 = arith.constant 5 : index
    %c3_29 = arith.constant 3 : index
    %c0_30 = arith.constant 0 : index
    %25 = vector.load %arg6[%c5, %c3_29, %c0_30] : memref<14x14x128xf32, #tpu.memory_space<vmem>>, vector<1x8x128xf32>
    %26 = vector.shape_cast %25 : vector<1x8x128xf32> to vector<8x128xf32>
    %27 = vector.shape_cast %24 : vector<8x128xf32> to vector<1x8x128xf32>
    tpu.vector_store %arg6[%c5, %c3_29, %c0_30], %27 {strides = array<i32>} : memref<14x14x128xf32, #tpu.memory_space<vmem>>, vector<1x8x128xf32>,
    %c0_31 = arith.constant 0 : index
    %c25 = arith.constant 25 : index
    %c0_32 = arith.constant 0 : index
    %28 = vector.load %arg2[%c0_31, %c25, %c0_32] : memref<1x65x128xf32, #tpu.memory_space<vmem>>, vector<1x8x128xf32>
    %29 = vector.shape_cast %28 : vector<1x8x128xf32> to vector<8x128xf32>
    %c6 = arith.constant 6 : index
    %c3_33 = arith.constant 3 : index
    %c0_34 = arith.constant 0 : index
    %30 = vector.load %arg6[%c6, %c3_33, %c0_34] : memref<14x14x128xf32, #tpu.memory_space<vmem>>, vector<1x8x128xf32>
    %31 = vector.shape_cast %30 : vector<1x8x128xf32> to vector<8x128xf32>
    %32 = vector.shape_cast %29 : vector<8x128xf32> to vector<1x8x128xf32>
    tpu.vector_store %arg6[%c6, %c3_33, %c0_34], %32 {strides = array<i32>} : memref<14x14x128xf32, #tpu.memory_space<vmem>>, vector<1x8x128xf32>,
    %c0_35 = arith.constant 0 : index
    %c33 = arith.constant 33 : index
    %c0_36 = arith.constant 0 : index
    %33 = vector.load %arg2[%c0_35, %c33, %c0_36] : memref<1x65x128xf32, #tpu.memory_space<vmem>>, vector<1x8x128xf32>
    %34 = vector.shape_cast %33 : vector<1x8x128xf32> to vector<8x128xf32>
    %c7 = arith.constant 7 : index
    %c3_37 = arith.constant 3 : index
    %c0_38 = arith.constant 0 : index
    %35 = vector.load %arg6[%c7, %c3_37, %c0_38] : memref<14x14x128xf32, #tpu.memory_space<vmem>>, vector<1x8x128xf32>
    %36 = vector.shape_cast %35 : vector<1x8x128xf32> to vector<8x128xf32>
    %37 = vector.shape_cast %34 : vector<8x128xf32> to vector<1x8x128xf32>
    tpu.vector_store %arg6[%c7, %c3_37, %c0_38], %37 {strides = array<i32>} : memref<14x14x128xf32, #tpu.memory_space<vmem>>, vector<1x8x128xf32>,
    %c0_39 = arith.constant 0 : index
    %c41 = arith.constant 41 : index
    %c0_40 = arith.constant 0 : index
    %38 = vector.load %arg2[%c0_39, %c41, %c0_40] : memref<1x65x128xf32, #tpu.memory_space<vmem>>, vector<1x8x128xf32>
    %39 = vector.shape_cast %38 : vector<1x8x128xf32> to vector<8x128xf32>
    %c8 = arith.constant 8 : index
    %c3_41 = arith.constant 3 : index
    %c0_42 = arith.constant 0 : index
    %40 = vector.load %arg6[%c8, %c3_41, %c0_42] : memref<14x14x128xf32, #tpu.memory_space<vmem>>, vector<1x8x128xf32>
    %41 = vector.shape_cast %40 : vector<1x8x128xf32> to vector<8x128xf32>
    %42 = vector.shape_cast %39 : vector<8x128xf32> to vector<1x8x128xf32>
    tpu.vector_store %arg6[%c8, %c3_41, %c0_42], %42 {strides = array<i32>} : memref<14x14x128xf32, #tpu.memory_space<vmem>>, vector<1x8x128xf32>,
    %c0_43 = arith.constant 0 : index
    %c49 = arith.constant 49 : index
    %c0_44 = arith.constant 0 : index
    %43 = vector.load %arg2[%c0_43, %c49, %c0_44] : memref<1x65x128xf32, #tpu.memory_space<vmem>>, vector<1x8x128xf32>
    %44 = vector.shape_cast %43 : vector<1x8x128xf32> to vector<8x128xf32>
    %c9_45 = arith.constant 9 : index
    %c3_46 = arith.constant 3 : index
    %c0_47 = arith.constant 0 : index
    %45 = vector.load %arg6[%c9_45, %c3_46, %c0_47] : memref<14x14x128xf32, #tpu.memory_space<vmem>>, vector<1x8x128xf32>
    %46 = vector.shape_cast %45 : vector<1x8x128xf32> to vector<8x128xf32>
    %47 = vector.shape_cast %44 : vector<8x128xf32> to vector<1x8x128xf32>
    tpu.vector_store %arg6[%c9_45, %c3_46, %c0_47], %47 {strides = array<i32>} : memref<14x14x128xf32, #tpu.memory_space<vmem>>, vector<1x8x128xf32>,
    %c0_48 = arith.constant 0 : index
    %c57 = arith.constant 57 : index
    %c0_49 = arith.constant 0 : index
    %48 = vector.load %arg2[%c0_48, %c57, %c0_49] : memref<1x65x128xf32, #tpu.memory_space<vmem>>, vector<1x8x128xf32>
    %49 = vector.shape_cast %48 : vector<1x8x128xf32> to vector<8x128xf32>
    %c10 = arith.constant 10 : index
    %c3_50 = arith.constant 3 : index
    %c0_51 = arith.constant 0 : index
    %50 = vector.load %arg6[%c10, %c3_50, %c0_51] : memref<14x14x128xf32, #tpu.memory_space<vmem>>, vector<1x8x128xf32>
    %51 = vector.shape_cast %50 : vector<1x8x128xf32> to vector<8x128xf32>
    %52 = vector.shape_cast %49 : vector<8x128xf32> to vector<1x8x128xf32>
    tpu.vector_store %arg6[%c10, %c3_50, %c0_51], %52 {strides = array<i32>} : memref<14x14x128xf32, #tpu.memory_space<vmem>>, vector<1x8x128xf32>,
    %c0_52 = arith.constant 0 : index
    %c0_53 = arith.constant 0 : index
    %c0_54 = arith.constant 0 : index
    %53 = vector.load %arg3[%c0_52, %c0_53, %c0_54] : memref<7x7x128xf32, #tpu.memory_space<vmem>>, vector<7x7x128xf32>
    %c0_55 = arith.constant 0 : index
    %c0_56 = arith.constant 0 : index
    %c0_57 = arith.constant 0 : index
    %54 = vector.load %arg4[%c0_55, %c0_56, %c0_57] : memref<1x1x128xf32, #tpu.memory_space<vmem>>, vector<1x1x128xf32>
    %55 = vector.shape_cast %54 : vector<1x1x128xf32> to vector<1x128xf32>
    %56 = vector.shape_cast %55 : vector<1x128xf32> to vector<1x1x128xf32>
    %57 = vector.broadcast %56 : vector<1x1x128xf32> to vector<8x8x128xf32>
    %c0_58 = arith.constant 0 : index
    %c0_59 = arith.constant 0 : index
    %c0_60 = arith.constant 0 : index
    %58 = vector.load %arg6[%c0_58, %c0_59, %c0_60] : memref<14x14x128xf32, #tpu.memory_space<vmem>>, vector<8x8x128xf32>
    %59 = vector.extract_strided_slice %53 {offsets = [0, 0, 0], sizes = [1, 1, 128], strides = [1, 1, 1]} : vector<7x7x128xf32> to vector<1x1x128xf32>
    %60 = vector.shape_cast %59 : vector<1x1x128xf32> to vector<128xf32>
    %61 = vector.shape_cast %60 : vector<128xf32> to vector<1x1x128xf32>
    %62 = vector.broadcast %61 : vector<1x1x128xf32> to vector<8x8x128xf32>
    %63 = arith.mulf %58, %62 : vector<8x8x128xf32>
    %64 = arith.addf %57, %63 : vector<8x8x128xf32>
    %c0_61 = arith.constant 0 : index
    %c1_62 = arith.constant 1 : index
    %c0_63 = arith.constant 0 : index
    %65 = vector.load %arg6[%c0_61, %c1_62, %c0_63] : memref<14x14x128xf32, #tpu.memory_space<vmem>>, vector<8x8x128xf32>
    %66 = vector.extract_strided_slice %53 {offsets = [0, 1, 0], sizes = [1, 1, 128], strides = [1, 1, 1]} : vector<7x7x128xf32> to vector<1x1x128xf32>
    %67 = vector.shape_cast %66 : vector<1x1x128xf32> to vector<128xf32>
    %68 = vector.shape_cast %67 : vector<128xf32> to vector<1x1x128xf32>
    %69 = vector.broadcast %68 : vector<1x1x128xf32> to vector<8x8x128xf32>
    %70 = arith.mulf %65, %69 : vector<8x8x128xf32>
    %71 = arith.addf %64, %70 : vector<8x8x128xf32>
    %c0_64 = arith.constant 0 : index
    %c2 = arith.constant 2 : index
    %c0_65 = arith.constant 0 : index
    %72 = vector.load %arg6[%c0_64, %c2, %c0_65] : memref<14x14x128xf32, #tpu.memory_space<vmem>>, vector<8x8x128xf32>
    %73 = vector.extract_strided_slice %53 {offsets = [0, 2, 0], sizes = [1, 1, 128], strides = [1, 1, 1]} : vector<7x7x128xf32> to vector<1x1x128xf32>
    %74 = vector.shape_cast %73 : vector<1x1x128xf32> to vector<128xf32>
    %75 = vector.shape_cast %74 : vector<128xf32> to vector<1x1x128xf32>
    %76 = vector.broadcast %75 : vector<1x1x128xf32> to vector<8x8x128xf32>
    %77 = arith.mulf %72, %76 : vector<8x8x128xf32>
    %78 = arith.addf %71, %77 : vector<8x8x128xf32>
    %c0_66 = arith.constant 0 : index
    %c3_67 = arith.constant 3 : index
    %c0_68 = arith.constant 0 : index
    %79 = vector.load %arg6[%c0_66, %c3_67, %c0_68] : memref<14x14x128xf32, #tpu.memory_space<vmem>>, vector<8x8x128xf32>
    %80 = vector.extract_strided_slice %53 {offsets = [0, 3, 0], sizes = [1, 1, 128], strides = [1, 1, 1]} : vector<7x7x128xf32> to vector<1x1x128xf32>
    %81 = vector.shape_cast %80 : vector<1x1x128xf32> to vector<128xf32>
    %82 = vector.shape_cast %81 : vector<128xf32> to vector<1x1x128xf32>
    %83 = vector.broadcast %82 : vector<1x1x128xf32> to vector<8x8x128xf32>
    %84 = arith.mulf %79, %83 : vector<8x8x128xf32>
    %85 = arith.addf %78, %84 : vector<8x8x128xf32>
    %c0_69 = arith.constant 0 : index
    %c4_70 = arith.constant 4 : index
    %c0_71 = arith.constant 0 : index
    %86 = vector.load %arg6[%c0_69, %c4_70, %c0_71] : memref<14x14x128xf32, #tpu.memory_space<vmem>>, vector<8x8x128xf32>
    %87 = vector.extract_strided_slice %53 {offsets = [0, 4, 0], sizes = [1, 1, 128], strides = [1, 1, 1]} : vector<7x7x128xf32> to vector<1x1x128xf32>
    %88 = vector.shape_cast %87 : vector<1x1x128xf32> to vector<128xf32>
    %89 = vector.shape_cast %88 : vector<128xf32> to vector<1x1x128xf32>
    %90 = vector.broadcast %89 : vector<1x1x128xf32> to vector<8x8x128xf32>
    %91 = arith.mulf %86, %90 : vector<8x8x128xf32>
    %92 = arith.addf %85, %91 : vector<8x8x128xf32>
    %c0_72 = arith.constant 0 : index
    %c5_73 = arith.constant 5 : index
    %c0_74 = arith.constant 0 : index
    %93 = vector.load %arg6[%c0_72, %c5_73, %c0_74] : memref<14x14x128xf32, #tpu.memory_space<vmem>>, vector<8x8x128xf32>
    %94 = vector.extract_strided_slice %53 {offsets = [0, 5, 0], sizes = [1, 1, 128], strides = [1, 1, 1]} : vector<7x7x128xf32> to vector<1x1x128xf32>
    %95 = vector.shape_cast %94 : vector<1x1x128xf32> to vector<128xf32>
    %96 = vector.shape_cast %95 : vector<128xf32> to vector<1x1x128xf32>
    %97 = vector.broadcast %96 : vector<1x1x128xf32> to vector<8x8x128xf32>
    %98 = arith.mulf %93, %97 : vector<8x8x128xf32>
    %99 = arith.addf %92, %98 : vector<8x8x128xf32>
    %c0_75 = arith.constant 0 : index
    %c6_76 = arith.constant 6 : index
    %c0_77 = arith.constant 0 : index
    %100 = vector.load %arg6[%c0_75, %c6_76, %c0_77] : memref<14x14x128xf32, #tpu.memory_space<vmem>>, vector<8x8x128xf32>
    %101 = vector.extract_strided_slice %53 {offsets = [0, 6, 0], sizes = [1, 1, 128], strides = [1, 1, 1]} : vector<7x7x128xf32> to vector<1x1x128xf32>
    %102 = vector.shape_cast %101 : vector<1x1x128xf32> to vector<128xf32>
    %103 = vector.shape_cast %102 : vector<128xf32> to vector<1x1x128xf32>
    %104 = vector.broadcast %103 : vector<1x1x128xf32> to vector<8x8x128xf32>
    %105 = arith.mulf %100, %104 : vector<8x8x128xf32>
    %106 = arith.addf %99, %105 : vector<8x8x128xf32>
    %c1_78 = arith.constant 1 : index
    %c0_79 = arith.constant 0 : index
    %c0_80 = arith.constant 0 : index
    %107 = vector.load %arg6[%c1_78, %c0_79, %c0_80] : memref<14x14x128xf32, #tpu.memory_space<vmem>>, vector<8x8x128xf32>
    %108 = vector.extract_strided_slice %53 {offsets = [1, 0, 0], sizes = [1, 1, 128], strides = [1, 1, 1]} : vector<7x7x128xf32> to vector<1x1x128xf32>
    %109 = vector.shape_cast %108 : vector<1x1x128xf32> to vector<128xf32>
    %110 = vector.shape_cast %109 : vector<128xf32> to vector<1x1x128xf32>
    %111 = vector.broadcast %110 : vector<1x1x128xf32> to vector<8x8x128xf32>
    %112 = arith.mulf %107, %111 : vector<8x8x128xf32>
    %113 = arith.addf %106, %112 : vector<8x8x128xf32>
    %c1_81 = arith.constant 1 : index
    %c1_82 = arith.constant 1 : index
    %c0_83 = arith.constant 0 : index
    %114 = vector.load %arg6[%c1_81, %c1_82, %c0_83] : memref<14x14x128xf32, #tpu.memory_space<vmem>>, vector<8x8x128xf32>
    %115 = vector.extract_strided_slice %53 {offsets = [1, 1, 0], sizes = [1, 1, 128], strides = [1, 1, 1]} : vector<7x7x128xf32> to vector<1x1x128xf32>
    %116 = vector.shape_cast %115 : vector<1x1x128xf32> to vector<128xf32>
    %117 = vector.shape_cast %116 : vector<128xf32> to vector<1x1x128xf32>
    %118 = vector.broadcast %117 : vector<1x1x128xf32> to vector<8x8x128xf32>
    %119 = arith.mulf %114, %118 : vector<8x8x128xf32>
    %120 = arith.addf %113, %119 : vector<8x8x128xf32>
    %c1_84 = arith.constant 1 : index
    %c2_85 = arith.constant 2 : index
    %c0_86 = arith.constant 0 : index
    %121 = vector.load %arg6[%c1_84, %c2_85, %c0_86] : memref<14x14x128xf32, #tpu.memory_space<vmem>>, vector<8x8x128xf32>
    %122 = vector.extract_strided_slice %53 {offsets = [1, 2, 0], sizes = [1, 1, 128], strides = [1, 1, 1]} : vector<7x7x128xf32> to vector<1x1x128xf32>
    %123 = vector.shape_cast %122 : vector<1x1x128xf32> to vector<128xf32>
    %124 = vector.shape_cast %123 : vector<128xf32> to vector<1x1x128xf32>
    %125 = vector.broadcast %124 : vector<1x1x128xf32> to vector<8x8x128xf32>
    %126 = arith.mulf %121, %125 : vector<8x8x128xf32>
    %127 = arith.addf %120, %126 : vector<8x8x128xf32>
    %c1_87 = arith.constant 1 : index
    %c3_88 = arith.constant 3 : index
    %c0_89 = arith.constant 0 : index
    %128 = vector.load %arg6[%c1_87, %c3_88, %c0_89] : memref<14x14x128xf32, #tpu.memory_space<vmem>>, vector<8x8x128xf32>
    %129 = vector.extract_strided_slice %53 {offsets = [1, 3, 0], sizes = [1, 1, 128], strides = [1, 1, 1]} : vector<7x7x128xf32> to vector<1x1x128xf32>
    %130 = vector.shape_cast %129 : vector<1x1x128xf32> to vector<128xf32>
    %131 = vector.shape_cast %130 : vector<128xf32> to vector<1x1x128xf32>
    %132 = vector.broadcast %131 : vector<1x1x128xf32> to vector<8x8x128xf32>
    %133 = arith.mulf %128, %132 : vector<8x8x128xf32>
    %134 = arith.addf %127, %133 : vector<8x8x128xf32>
    %c1_90 = arith.constant 1 : index
    %c4_91 = arith.constant 4 : index
    %c0_92 = arith.constant 0 : index
    %135 = vector.load %arg6[%c1_90, %c4_91, %c0_92] : memref<14x14x128xf32, #tpu.memory_space<vmem>>, vector<8x8x128xf32>
    %136 = vector.extract_strided_slice %53 {offsets = [1, 4, 0], sizes = [1, 1, 128], strides = [1, 1, 1]} : vector<7x7x128xf32> to vector<1x1x128xf32>
    %137 = vector.shape_cast %136 : vector<1x1x128xf32> to vector<128xf32>
    %138 = vector.shape_cast %137 : vector<128xf32> to vector<1x1x128xf32>
    %139 = vector.broadcast %138 : vector<1x1x128xf32> to vector<8x8x128xf32>
    %140 = arith.mulf %135, %139 : vector<8x8x128xf32>
    %141 = arith.addf %134, %140 : vector<8x8x128xf32>
    %c1_93 = arith.constant 1 : index
    %c5_94 = arith.constant 5 : index
    %c0_95 = arith.constant 0 : index
    %142 = vector.load %arg6[%c1_93, %c5_94, %c0_95] : memref<14x14x128xf32, #tpu.memory_space<vmem>>, vector<8x8x128xf32>
    %143 = vector.extract_strided_slice %53 {offsets = [1, 5, 0], sizes = [1, 1, 128], strides = [1, 1, 1]} : vector<7x7x128xf32> to vector<1x1x128xf32>
    %144 = vector.shape_cast %143 : vector<1x1x128xf32> to vector<128xf32>
    %145 = vector.shape_cast %144 : vector<128xf32> to vector<1x1x128xf32>
    %146 = vector.broadcast %145 : vector<1x1x128xf32> to vector<8x8x128xf32>
    %147 = arith.mulf %142, %146 : vector<8x8x128xf32>
    %148 = arith.addf %141, %147 : vector<8x8x128xf32>
    %c1_96 = arith.constant 1 : index
    %c6_97 = arith.constant 6 : index
    %c0_98 = arith.constant 0 : index
    %149 = vector.load %arg6[%c1_96, %c6_97, %c0_98] : memref<14x14x128xf32, #tpu.memory_space<vmem>>, vector<8x8x128xf32>
    %150 = vector.extract_strided_slice %53 {offsets = [1, 6, 0], sizes = [1, 1, 128], strides = [1, 1, 1]} : vector<7x7x128xf32> to vector<1x1x128xf32>
    %151 = vector.shape_cast %150 : vector<1x1x128xf32> to vector<128xf32>
    %152 = vector.shape_cast %151 : vector<128xf32> to vector<1x1x128xf32>
    %153 = vector.broadcast %152 : vector<1x1x128xf32> to vector<8x8x128xf32>
    %154 = arith.mulf %149, %153 : vector<8x8x128xf32>
    %155 = arith.addf %148, %154 : vector<8x8x128xf32>
    %c2_99 = arith.constant 2 : index
    %c0_100 = arith.constant 0 : index
    %c0_101 = arith.constant 0 : index
    %156 = vector.load %arg6[%c2_99, %c0_100, %c0_101] : memref<14x14x128xf32, #tpu.memory_space<vmem>>, vector<8x8x128xf32>
    %157 = vector.extract_strided_slice %53 {offsets = [2, 0, 0], sizes = [1, 1, 128], strides = [1, 1, 1]} : vector<7x7x128xf32> to vector<1x1x128xf32>
    %158 = vector.shape_cast %157 : vector<1x1x128xf32> to vector<128xf32>
    %159 = vector.shape_cast %158 : vector<128xf32> to vector<1x1x128xf32>
    %160 = vector.broadcast %159 : vector<1x1x128xf32> to vector<8x8x128xf32>
    %161 = arith.mulf %156, %160 : vector<8x8x128xf32>
    %162 = arith.addf %155, %161 : vector<8x8x128xf32>
    %c2_102 = arith.constant 2 : index
    %c1_103 = arith.constant 1 : index
    %c0_104 = arith.constant 0 : index
    %163 = vector.load %arg6[%c2_102, %c1_103, %c0_104] : memref<14x14x128xf32, #tpu.memory_space<vmem>>, vector<8x8x128xf32>
    %164 = vector.extract_strided_slice %53 {offsets = [2, 1, 0], sizes = [1, 1, 128], strides = [1, 1, 1]} : vector<7x7x128xf32> to vector<1x1x128xf32>
    %165 = vector.shape_cast %164 : vector<1x1x128xf32> to vector<128xf32>
    %166 = vector.shape_cast %165 : vector<128xf32> to vector<1x1x128xf32>
    %167 = vector.broadcast %166 : vector<1x1x128xf32> to vector<8x8x128xf32>
    %168 = arith.mulf %163, %167 : vector<8x8x128xf32>
    %169 = arith.addf %162, %168 : vector<8x8x128xf32>
    %c2_105 = arith.constant 2 : index
    %c2_106 = arith.constant 2 : index
    %c0_107 = arith.constant 0 : index
    %170 = vector.load %arg6[%c2_105, %c2_106, %c0_107] : memref<14x14x128xf32, #tpu.memory_space<vmem>>, vector<8x8x128xf32>
    %171 = vector.extract_strided_slice %53 {offsets = [2, 2, 0], sizes = [1, 1, 128], strides = [1, 1, 1]} : vector<7x7x128xf32> to vector<1x1x128xf32>
    %172 = vector.shape_cast %171 : vector<1x1x128xf32> to vector<128xf32>
    %173 = vector.shape_cast %172 : vector<128xf32> to vector<1x1x128xf32>
    %174 = vector.broadcast %173 : vector<1x1x128xf32> to vector<8x8x128xf32>
    %175 = arith.mulf %170, %174 : vector<8x8x128xf32>
    %176 = arith.addf %169, %175 : vector<8x8x128xf32>
    %c2_108 = arith.constant 2 : index
    %c3_109 = arith.constant 3 : index
    %c0_110 = arith.constant 0 : index
    %177 = vector.load %arg6[%c2_108, %c3_109, %c0_110] : memref<14x14x128xf32, #tpu.memory_space<vmem>>, vector<8x8x128xf32>
    %178 = vector.extract_strided_slice %53 {offsets = [2, 3, 0], sizes = [1, 1, 128], strides = [1, 1, 1]} : vector<7x7x128xf32> to vector<1x1x128xf32>
    %179 = vector.shape_cast %178 : vector<1x1x128xf32> to vector<128xf32>
    %180 = vector.shape_cast %179 : vector<128xf32> to vector<1x1x128xf32>
    %181 = vector.broadcast %180 : vector<1x1x128xf32> to vector<8x8x128xf32>
    %182 = arith.mulf %177, %181 : vector<8x8x128xf32>
    %183 = arith.addf %176, %182 : vector<8x8x128xf32>
    %c2_111 = arith.constant 2 : index
    %c4_112 = arith.constant 4 : index
    %c0_113 = arith.constant 0 : index
    %184 = vector.load %arg6[%c2_111, %c4_112, %c0_113] : memref<14x14x128xf32, #tpu.memory_space<vmem>>, vector<8x8x128xf32>
    %185 = vector.extract_strided_slice %53 {offsets = [2, 4, 0], sizes = [1, 1, 128], strides = [1, 1, 1]} : vector<7x7x128xf32> to vector<1x1x128xf32>
    %186 = vector.shape_cast %185 : vector<1x1x128xf32> to vector<128xf32>
    %187 = vector.shape_cast %186 : vector<128xf32> to vector<1x1x128xf32>
    %188 = vector.broadcast %187 : vector<1x1x128xf32> to vector<8x8x128xf32>
    %189 = arith.mulf %184, %188 : vector<8x8x128xf32>
    %190 = arith.addf %183, %189 : vector<8x8x128xf32>
    %c2_114 = arith.constant 2 : index
    %c5_115 = arith.constant 5 : index
    %c0_116 = arith.constant 0 : index
    %191 = vector.load %arg6[%c2_114, %c5_115, %c0_116] : memref<14x14x128xf32, #tpu.memory_space<vmem>>, vector<8x8x128xf32>
    %192 = vector.extract_strided_slice %53 {offsets = [2, 5, 0], sizes = [1, 1, 128], strides = [1, 1, 1]} : vector<7x7x128xf32> to vector<1x1x128xf32>
    %193 = vector.shape_cast %192 : vector<1x1x128xf32> to vector<128xf32>
    %194 = vector.shape_cast %193 : vector<128xf32> to vector<1x1x128xf32>
    %195 = vector.broadcast %194 : vector<1x1x128xf32> to vector<8x8x128xf32>
    %196 = arith.mulf %191, %195 : vector<8x8x128xf32>
    %197 = arith.addf %190, %196 : vector<8x8x128xf32>
    %c2_117 = arith.constant 2 : index
    %c6_118 = arith.constant 6 : index
    %c0_119 = arith.constant 0 : index
    %198 = vector.load %arg6[%c2_117, %c6_118, %c0_119] : memref<14x14x128xf32, #tpu.memory_space<vmem>>, vector<8x8x128xf32>
    %199 = vector.extract_strided_slice %53 {offsets = [2, 6, 0], sizes = [1, 1, 128], strides = [1, 1, 1]} : vector<7x7x128xf32> to vector<1x1x128xf32>
    %200 = vector.shape_cast %199 : vector<1x1x128xf32> to vector<128xf32>
    %201 = vector.shape_cast %200 : vector<128xf32> to vector<1x1x128xf32>
    %202 = vector.broadcast %201 : vector<1x1x128xf32> to vector<8x8x128xf32>
    %203 = arith.mulf %198, %202 : vector<8x8x128xf32>
    %204 = arith.addf %197, %203 : vector<8x8x128xf32>
    %c3_120 = arith.constant 3 : index
    %c0_121 = arith.constant 0 : index
    %c0_122 = arith.constant 0 : index
    %205 = vector.load %arg6[%c3_120, %c0_121, %c0_122] : memref<14x14x128xf32, #tpu.memory_space<vmem>>, vector<8x8x128xf32>
    %206 = vector.extract_strided_slice %53 {offsets = [3, 0, 0], sizes = [1, 1, 128], strides = [1, 1, 1]} : vector<7x7x128xf32> to vector<1x1x128xf32>
    %207 = vector.shape_cast %206 : vector<1x1x128xf32> to vector<128xf32>
    %208 = vector.shape_cast %207 : vector<128xf32> to vector<1x1x128xf32>
    %209 = vector.broadcast %208 : vector<1x1x128xf32> to vector<8x8x128xf32>
    %210 = arith.mulf %205, %209 : vector<8x8x128xf32>
    %211 = arith.addf %204, %210 : vector<8x8x128xf32>
    %c3_123 = arith.constant 3 : index
    %c1_124 = arith.constant 1 : index
    %c0_125 = arith.constant 0 : index
    %212 = vector.load %arg6[%c3_123, %c1_124, %c0_125] : memref<14x14x128xf32, #tpu.memory_space<vmem>>, vector<8x8x128xf32>
    %213 = vector.extract_strided_slice %53 {offsets = [3, 1, 0], sizes = [1, 1, 128], strides = [1, 1, 1]} : vector<7x7x128xf32> to vector<1x1x128xf32>
    %214 = vector.shape_cast %213 : vector<1x1x128xf32> to vector<128xf32>
    %215 = vector.shape_cast %214 : vector<128xf32> to vector<1x1x128xf32>
    %216 = vector.broadcast %215 : vector<1x1x128xf32> to vector<8x8x128xf32>
    %217 = arith.mulf %212, %216 : vector<8x8x128xf32>
    %218 = arith.addf %211, %217 : vector<8x8x128xf32>
    %c3_126 = arith.constant 3 : index
    %c2_127 = arith.constant 2 : index
    %c0_128 = arith.constant 0 : index
    %219 = vector.load %arg6[%c3_126, %c2_127, %c0_128] : memref<14x14x128xf32, #tpu.memory_space<vmem>>, vector<8x8x128xf32>
    %220 = vector.extract_strided_slice %53 {offsets = [3, 2, 0], sizes = [1, 1, 128], strides = [1, 1, 1]} : vector<7x7x128xf32> to vector<1x1x128xf32>
    %221 = vector.shape_cast %220 : vector<1x1x128xf32> to vector<128xf32>
    %222 = vector.shape_cast %221 : vector<128xf32> to vector<1x1x128xf32>
    %223 = vector.broadcast %222 : vector<1x1x128xf32> to vector<8x8x128xf32>
    %224 = arith.mulf %219, %223 : vector<8x8x128xf32>
    %225 = arith.addf %218, %224 : vector<8x8x128xf32>
    %c3_129 = arith.constant 3 : index
    %c3_130 = arith.constant 3 : index
    %c0_131 = arith.constant 0 : index
    %226 = vector.load %arg6[%c3_129, %c3_130, %c0_131] : memref<14x14x128xf32, #tpu.memory_space<vmem>>, vector<8x8x128xf32>
    %227 = vector.extract_strided_slice %53 {offsets = [3, 3, 0], sizes = [1, 1, 128], strides = [1, 1, 1]} : vector<7x7x128xf32> to vector<1x1x128xf32>
    %228 = vector.shape_cast %227 : vector<1x1x128xf32> to vector<128xf32>
    %229 = vector.shape_cast %228 : vector<128xf32> to vector<1x1x128xf32>
    %230 = vector.broadcast %229 : vector<1x1x128xf32> to vector<8x8x128xf32>
    %231 = arith.mulf %226, %230 : vector<8x8x128xf32>
    %232 = arith.addf %225, %231 : vector<8x8x128xf32>
    %c3_132 = arith.constant 3 : index
    %c4_133 = arith.constant 4 : index
    %c0_134 = arith.constant 0 : index
    %233 = vector.load %arg6[%c3_132, %c4_133, %c0_134] : memref<14x14x128xf32, #tpu.memory_space<vmem>>, vector<8x8x128xf32>
    %234 = vector.extract_strided_slice %53 {offsets = [3, 4, 0], sizes = [1, 1, 128], strides = [1, 1, 1]} : vector<7x7x128xf32> to vector<1x1x128xf32>
    %235 = vector.shape_cast %234 : vector<1x1x128xf32> to vector<128xf32>
    %236 = vector.shape_cast %235 : vector<128xf32> to vector<1x1x128xf32>
    %237 = vector.broadcast %236 : vector<1x1x128xf32> to vector<8x8x128xf32>
    %238 = arith.mulf %233, %237 : vector<8x8x128xf32>
    %239 = arith.addf %232, %238 : vector<8x8x128xf32>
    %c3_135 = arith.constant 3 : index
    %c5_136 = arith.constant 5 : index
    %c0_137 = arith.constant 0 : index
    %240 = vector.load %arg6[%c3_135, %c5_136, %c0_137] : memref<14x14x128xf32, #tpu.memory_space<vmem>>, vector<8x8x128xf32>
    %241 = vector.extract_strided_slice %53 {offsets = [3, 5, 0], sizes = [1, 1, 128], strides = [1, 1, 1]} : vector<7x7x128xf32> to vector<1x1x128xf32>
    %242 = vector.shape_cast %241 : vector<1x1x128xf32> to vector<128xf32>
    %243 = vector.shape_cast %242 : vector<128xf32> to vector<1x1x128xf32>
    %244 = vector.broadcast %243 : vector<1x1x128xf32> to vector<8x8x128xf32>
    %245 = arith.mulf %240, %244 : vector<8x8x128xf32>
    %246 = arith.addf %239, %245 : vector<8x8x128xf32>
    %c3_138 = arith.constant 3 : index
    %c6_139 = arith.constant 6 : index
    %c0_140 = arith.constant 0 : index
    %247 = vector.load %arg6[%c3_138, %c6_139, %c0_140] : memref<14x14x128xf32, #tpu.memory_space<vmem>>, vector<8x8x128xf32>
    %248 = vector.extract_strided_slice %53 {offsets = [3, 6, 0], sizes = [1, 1, 128], strides = [1, 1, 1]} : vector<7x7x128xf32> to vector<1x1x128xf32>
    %249 = vector.shape_cast %248 : vector<1x1x128xf32> to vector<128xf32>
    %250 = vector.shape_cast %249 : vector<128xf32> to vector<1x1x128xf32>
    %251 = vector.broadcast %250 : vector<1x1x128xf32> to vector<8x8x128xf32>
    %252 = arith.mulf %247, %251 : vector<8x8x128xf32>
    %253 = arith.addf %246, %252 : vector<8x8x128xf32>
    %c4_141 = arith.constant 4 : index
    %c0_142 = arith.constant 0 : index
    %c0_143 = arith.constant 0 : index
    %254 = vector.load %arg6[%c4_141, %c0_142, %c0_143] : memref<14x14x128xf32, #tpu.memory_space<vmem>>, vector<8x8x128xf32>
    %255 = vector.extract_strided_slice %53 {offsets = [4, 0, 0], sizes = [1, 1, 128], strides = [1, 1, 1]} : vector<7x7x128xf32> to vector<1x1x128xf32>
    %256 = vector.shape_cast %255 : vector<1x1x128xf32> to vector<128xf32>
    %257 = vector.shape_cast %256 : vector<128xf32> to vector<1x1x128xf32>
    %258 = vector.broadcast %257 : vector<1x1x128xf32> to vector<8x8x128xf32>
    %259 = arith.mulf %254, %258 : vector<8x8x128xf32>
    %260 = arith.addf %253, %259 : vector<8x8x128xf32>
    %c4_144 = arith.constant 4 : index
    %c1_145 = arith.constant 1 : index
    %c0_146 = arith.constant 0 : index
    %261 = vector.load %arg6[%c4_144, %c1_145, %c0_146] : memref<14x14x128xf32, #tpu.memory_space<vmem>>, vector<8x8x128xf32>
    %262 = vector.extract_strided_slice %53 {offsets = [4, 1, 0], sizes = [1, 1, 128], strides = [1, 1, 1]} : vector<7x7x128xf32> to vector<1x1x128xf32>
    %263 = vector.shape_cast %262 : vector<1x1x128xf32> to vector<128xf32>
    %264 = vector.shape_cast %263 : vector<128xf32> to vector<1x1x128xf32>
    %265 = vector.broadcast %264 : vector<1x1x128xf32> to vector<8x8x128xf32>
    %266 = arith.mulf %261, %265 : vector<8x8x128xf32>
    %267 = arith.addf %260, %266 : vector<8x8x128xf32>
    %c4_147 = arith.constant 4 : index
    %c2_148 = arith.constant 2 : index
    %c0_149 = arith.constant 0 : index
    %268 = vector.load %arg6[%c4_147, %c2_148, %c0_149] : memref<14x14x128xf32, #tpu.memory_space<vmem>>, vector<8x8x128xf32>
    %269 = vector.extract_strided_slice %53 {offsets = [4, 2, 0], sizes = [1, 1, 128], strides = [1, 1, 1]} : vector<7x7x128xf32> to vector<1x1x128xf32>
    %270 = vector.shape_cast %269 : vector<1x1x128xf32> to vector<128xf32>
    %271 = vector.shape_cast %270 : vector<128xf32> to vector<1x1x128xf32>
    %272 = vector.broadcast %271 : vector<1x1x128xf32> to vector<8x8x128xf32>
    %273 = arith.mulf %268, %272 : vector<8x8x128xf32>
    %274 = arith.addf %267, %273 : vector<8x8x128xf32>
    %c4_150 = arith.constant 4 : index
    %c3_151 = arith.constant 3 : index
    %c0_152 = arith.constant 0 : index
    %275 = vector.load %arg6[%c4_150, %c3_151, %c0_152] : memref<14x14x128xf32, #tpu.memory_space<vmem>>, vector<8x8x128xf32>
    %276 = vector.extract_strided_slice %53 {offsets = [4, 3, 0], sizes = [1, 1, 128], strides = [1, 1, 1]} : vector<7x7x128xf32> to vector<1x1x128xf32>
    %277 = vector.shape_cast %276 : vector<1x1x128xf32> to vector<128xf32>
    %278 = vector.shape_cast %277 : vector<128xf32> to vector<1x1x128xf32>
    %279 = vector.broadcast %278 : vector<1x1x128xf32> to vector<8x8x128xf32>
    %280 = arith.mulf %275, %279 : vector<8x8x128xf32>
    %281 = arith.addf %274, %280 : vector<8x8x128xf32>
    %c4_153 = arith.constant 4 : index
    %c4_154 = arith.constant 4 : index
    %c0_155 = arith.constant 0 : index
    %282 = vector.load %arg6[%c4_153, %c4_154, %c0_155] : memref<14x14x128xf32, #tpu.memory_space<vmem>>, vector<8x8x128xf32>
    %283 = vector.extract_strided_slice %53 {offsets = [4, 4, 0], sizes = [1, 1, 128], strides = [1, 1, 1]} : vector<7x7x128xf32> to vector<1x1x128xf32>
    %284 = vector.shape_cast %283 : vector<1x1x128xf32> to vector<128xf32>
    %285 = vector.shape_cast %284 : vector<128xf32> to vector<1x1x128xf32>
    %286 = vector.broadcast %285 : vector<1x1x128xf32> to vector<8x8x128xf32>
    %287 = arith.mulf %282, %286 : vector<8x8x128xf32>
    %288 = arith.addf %281, %287 : vector<8x8x128xf32>
    %c4_156 = arith.constant 4 : index
    %c5_157 = arith.constant 5 : index
    %c0_158 = arith.constant 0 : index
    %289 = vector.load %arg6[%c4_156, %c5_157, %c0_158] : memref<14x14x128xf32, #tpu.memory_space<vmem>>, vector<8x8x128xf32>
    %290 = vector.extract_strided_slice %53 {offsets = [4, 5, 0], sizes = [1, 1, 128], strides = [1, 1, 1]} : vector<7x7x128xf32> to vector<1x1x128xf32>
    %291 = vector.shape_cast %290 : vector<1x1x128xf32> to vector<128xf32>
    %292 = vector.shape_cast %291 : vector<128xf32> to vector<1x1x128xf32>
    %293 = vector.broadcast %292 : vector<1x1x128xf32> to vector<8x8x128xf32>
    %294 = arith.mulf %289, %293 : vector<8x8x128xf32>
    %295 = arith.addf %288, %294 : vector<8x8x128xf32>
    %c4_159 = arith.constant 4 : index
    %c6_160 = arith.constant 6 : index
    %c0_161 = arith.constant 0 : index
    %296 = vector.load %arg6[%c4_159, %c6_160, %c0_161] : memref<14x14x128xf32, #tpu.memory_space<vmem>>, vector<8x8x128xf32>
    %297 = vector.extract_strided_slice %53 {offsets = [4, 6, 0], sizes = [1, 1, 128], strides = [1, 1, 1]} : vector<7x7x128xf32> to vector<1x1x128xf32>
    %298 = vector.shape_cast %297 : vector<1x1x128xf32> to vector<128xf32>
    %299 = vector.shape_cast %298 : vector<128xf32> to vector<1x1x128xf32>
    %300 = vector.broadcast %299 : vector<1x1x128xf32> to vector<8x8x128xf32>
    %301 = arith.mulf %296, %300 : vector<8x8x128xf32>
    %302 = arith.addf %295, %301 : vector<8x8x128xf32>
    %c5_162 = arith.constant 5 : index
    %c0_163 = arith.constant 0 : index
    %c0_164 = arith.constant 0 : index
    %303 = vector.load %arg6[%c5_162, %c0_163, %c0_164] : memref<14x14x128xf32, #tpu.memory_space<vmem>>, vector<8x8x128xf32>
    %304 = vector.extract_strided_slice %53 {offsets = [5, 0, 0], sizes = [1, 1, 128], strides = [1, 1, 1]} : vector<7x7x128xf32> to vector<1x1x128xf32>
    %305 = vector.shape_cast %304 : vector<1x1x128xf32> to vector<128xf32>
    %306 = vector.shape_cast %305 : vector<128xf32> to vector<1x1x128xf32>
    %307 = vector.broadcast %306 : vector<1x1x128xf32> to vector<8x8x128xf32>
    %308 = arith.mulf %303, %307 : vector<8x8x128xf32>
    %309 = arith.addf %302, %308 : vector<8x8x128xf32>
    %c5_165 = arith.constant 5 : index
    %c1_166 = arith.constant 1 : index
    %c0_167 = arith.constant 0 : index
    %310 = vector.load %arg6[%c5_165, %c1_166, %c0_167] : memref<14x14x128xf32, #tpu.memory_space<vmem>>, vector<8x8x128xf32>
    %311 = vector.extract_strided_slice %53 {offsets = [5, 1, 0], sizes = [1, 1, 128], strides = [1, 1, 1]} : vector<7x7x128xf32> to vector<1x1x128xf32>
    %312 = vector.shape_cast %311 : vector<1x1x128xf32> to vector<128xf32>
    %313 = vector.shape_cast %312 : vector<128xf32> to vector<1x1x128xf32>
    %314 = vector.broadcast %313 : vector<1x1x128xf32> to vector<8x8x128xf32>
    %315 = arith.mulf %310, %314 : vector<8x8x128xf32>
    %316 = arith.addf %309, %315 : vector<8x8x128xf32>
    %c5_168 = arith.constant 5 : index
    %c2_169 = arith.constant 2 : index
    %c0_170 = arith.constant 0 : index
    %317 = vector.load %arg6[%c5_168, %c2_169, %c0_170] : memref<14x14x128xf32, #tpu.memory_space<vmem>>, vector<8x8x128xf32>
    %318 = vector.extract_strided_slice %53 {offsets = [5, 2, 0], sizes = [1, 1, 128], strides = [1, 1, 1]} : vector<7x7x128xf32> to vector<1x1x128xf32>
    %319 = vector.shape_cast %318 : vector<1x1x128xf32> to vector<128xf32>
    %320 = vector.shape_cast %319 : vector<128xf32> to vector<1x1x128xf32>
    %321 = vector.broadcast %320 : vector<1x1x128xf32> to vector<8x8x128xf32>
    %322 = arith.mulf %317, %321 : vector<8x8x128xf32>
    %323 = arith.addf %316, %322 : vector<8x8x128xf32>
    %c5_171 = arith.constant 5 : index
    %c3_172 = arith.constant 3 : index
    %c0_173 = arith.constant 0 : index
    %324 = vector.load %arg6[%c5_171, %c3_172, %c0_173] : memref<14x14x128xf32, #tpu.memory_space<vmem>>, vector<8x8x128xf32>
    %325 = vector.extract_strided_slice %53 {offsets = [5, 3, 0], sizes = [1, 1, 128], strides = [1, 1, 1]} : vector<7x7x128xf32> to vector<1x1x128xf32>
    %326 = vector.shape_cast %325 : vector<1x1x128xf32> to vector<128xf32>
    %327 = vector.shape_cast %326 : vector<128xf32> to vector<1x1x128xf32>
    %328 = vector.broadcast %327 : vector<1x1x128xf32> to vector<8x8x128xf32>
    %329 = arith.mulf %324, %328 : vector<8x8x128xf32>
    %330 = arith.addf %323, %329 : vector<8x8x128xf32>
    %c5_174 = arith.constant 5 : index
    %c4_175 = arith.constant 4 : index
    %c0_176 = arith.constant 0 : index
    %331 = vector.load %arg6[%c5_174, %c4_175, %c0_176] : memref<14x14x128xf32, #tpu.memory_space<vmem>>, vector<8x8x128xf32>
    %332 = vector.extract_strided_slice %53 {offsets = [5, 4, 0], sizes = [1, 1, 128], strides = [1, 1, 1]} : vector<7x7x128xf32> to vector<1x1x128xf32>
    %333 = vector.shape_cast %332 : vector<1x1x128xf32> to vector<128xf32>
    %334 = vector.shape_cast %333 : vector<128xf32> to vector<1x1x128xf32>
    %335 = vector.broadcast %334 : vector<1x1x128xf32> to vector<8x8x128xf32>
    %336 = arith.mulf %331, %335 : vector<8x8x128xf32>
    %337 = arith.addf %330, %336 : vector<8x8x128xf32>
    %c5_177 = arith.constant 5 : index
    %c5_178 = arith.constant 5 : index
    %c0_179 = arith.constant 0 : index
    %338 = vector.load %arg6[%c5_177, %c5_178, %c0_179] : memref<14x14x128xf32, #tpu.memory_space<vmem>>, vector<8x8x128xf32>
    %339 = vector.extract_strided_slice %53 {offsets = [5, 5, 0], sizes = [1, 1, 128], strides = [1, 1, 1]} : vector<7x7x128xf32> to vector<1x1x128xf32>
    %340 = vector.shape_cast %339 : vector<1x1x128xf32> to vector<128xf32>
    %341 = vector.shape_cast %340 : vector<128xf32> to vector<1x1x128xf32>
    %342 = vector.broadcast %341 : vector<1x1x128xf32> to vector<8x8x128xf32>
    %343 = arith.mulf %338, %342 : vector<8x8x128xf32>
    %344 = arith.addf %337, %343 : vector<8x8x128xf32>
    %c5_180 = arith.constant 5 : index
    %c6_181 = arith.constant 6 : index
    %c0_182 = arith.constant 0 : index
    %345 = vector.load %arg6[%c5_180, %c6_181, %c0_182] : memref<14x14x128xf32, #tpu.memory_space<vmem>>, vector<8x8x128xf32>
    %346 = vector.extract_strided_slice %53 {offsets = [5, 6, 0], sizes = [1, 1, 128], strides = [1, 1, 1]} : vector<7x7x128xf32> to vector<1x1x128xf32>
    %347 = vector.shape_cast %346 : vector<1x1x128xf32> to vector<128xf32>
    %348 = vector.shape_cast %347 : vector<128xf32> to vector<1x1x128xf32>
    %349 = vector.broadcast %348 : vector<1x1x128xf32> to vector<8x8x128xf32>
    %350 = arith.mulf %345, %349 : vector<8x8x128xf32>
    %351 = arith.addf %344, %350 : vector<8x8x128xf32>
    %c6_183 = arith.constant 6 : index
    %c0_184 = arith.constant 0 : index
    %c0_185 = arith.constant 0 : index
    %352 = vector.load %arg6[%c6_183, %c0_184, %c0_185] : memref<14x14x128xf32, #tpu.memory_space<vmem>>, vector<8x8x128xf32>
    %353 = vector.extract_strided_slice %53 {offsets = [6, 0, 0], sizes = [1, 1, 128], strides = [1, 1, 1]} : vector<7x7x128xf32> to vector<1x1x128xf32>
    %354 = vector.shape_cast %353 : vector<1x1x128xf32> to vector<128xf32>
    %355 = vector.shape_cast %354 : vector<128xf32> to vector<1x1x128xf32>
    %356 = vector.broadcast %355 : vector<1x1x128xf32> to vector<8x8x128xf32>
    %357 = arith.mulf %352, %356 : vector<8x8x128xf32>
    %358 = arith.addf %351, %357 : vector<8x8x128xf32>
    %c6_186 = arith.constant 6 : index
    %c1_187 = arith.constant 1 : index
    %c0_188 = arith.constant 0 : index
    %359 = vector.load %arg6[%c6_186, %c1_187, %c0_188] : memref<14x14x128xf32, #tpu.memory_space<vmem>>, vector<8x8x128xf32>
    %360 = vector.extract_strided_slice %53 {offsets = [6, 1, 0], sizes = [1, 1, 128], strides = [1, 1, 1]} : vector<7x7x128xf32> to vector<1x1x128xf32>
    %361 = vector.shape_cast %360 : vector<1x1x128xf32> to vector<128xf32>
    %362 = vector.shape_cast %361 : vector<128xf32> to vector<1x1x128xf32>
    %363 = vector.broadcast %362 : vector<1x1x128xf32> to vector<8x8x128xf32>
    %364 = arith.mulf %359, %363 : vector<8x8x128xf32>
    %365 = arith.addf %358, %364 : vector<8x8x128xf32>
    %c6_189 = arith.constant 6 : index
    %c2_190 = arith.constant 2 : index
    %c0_191 = arith.constant 0 : index
    %366 = vector.load %arg6[%c6_189, %c2_190, %c0_191] : memref<14x14x128xf32, #tpu.memory_space<vmem>>, vector<8x8x128xf32>
    %367 = vector.extract_strided_slice %53 {offsets = [6, 2, 0], sizes = [1, 1, 128], strides = [1, 1, 1]} : vector<7x7x128xf32> to vector<1x1x128xf32>
    %368 = vector.shape_cast %367 : vector<1x1x128xf32> to vector<128xf32>
    %369 = vector.shape_cast %368 : vector<128xf32> to vector<1x1x128xf32>
    %370 = vector.broadcast %369 : vector<1x1x128xf32> to vector<8x8x128xf32>
    %371 = arith.mulf %366, %370 : vector<8x8x128xf32>
    %372 = arith.addf %365, %371 : vector<8x8x128xf32>
    %c6_192 = arith.constant 6 : index
    %c3_193 = arith.constant 3 : index
    %c0_194 = arith.constant 0 : index
    %373 = vector.load %arg6[%c6_192, %c3_193, %c0_194] : memref<14x14x128xf32, #tpu.memory_space<vmem>>, vector<8x8x128xf32>
    %374 = vector.extract_strided_slice %53 {offsets = [6, 3, 0], sizes = [1, 1, 128], strides = [1, 1, 1]} : vector<7x7x128xf32> to vector<1x1x128xf32>
    %375 = vector.shape_cast %374 : vector<1x1x128xf32> to vector<128xf32>
    %376 = vector.shape_cast %375 : vector<128xf32> to vector<1x1x128xf32>
    %377 = vector.broadcast %376 : vector<1x1x128xf32> to vector<8x8x128xf32>
    %378 = arith.mulf %373, %377 : vector<8x8x128xf32>
    %379 = arith.addf %372, %378 : vector<8x8x128xf32>
    %c6_195 = arith.constant 6 : index
    %c4_196 = arith.constant 4 : index
    %c0_197 = arith.constant 0 : index
    %380 = vector.load %arg6[%c6_195, %c4_196, %c0_197] : memref<14x14x128xf32, #tpu.memory_space<vmem>>, vector<8x8x128xf32>
    %381 = vector.extract_strided_slice %53 {offsets = [6, 4, 0], sizes = [1, 1, 128], strides = [1, 1, 1]} : vector<7x7x128xf32> to vector<1x1x128xf32>
    %382 = vector.shape_cast %381 : vector<1x1x128xf32> to vector<128xf32>
    %383 = vector.shape_cast %382 : vector<128xf32> to vector<1x1x128xf32>
    %384 = vector.broadcast %383 : vector<1x1x128xf32> to vector<8x8x128xf32>
    %385 = arith.mulf %380, %384 : vector<8x8x128xf32>
    %386 = arith.addf %379, %385 : vector<8x8x128xf32>
    %c6_198 = arith.constant 6 : index
    %c5_199 = arith.constant 5 : index
    %c0_200 = arith.constant 0 : index
    %387 = vector.load %arg6[%c6_198, %c5_199, %c0_200] : memref<14x14x128xf32, #tpu.memory_space<vmem>>, vector<8x8x128xf32>
    %388 = vector.extract_strided_slice %53 {offsets = [6, 5, 0], sizes = [1, 1, 128], strides = [1, 1, 1]} : vector<7x7x128xf32> to vector<1x1x128xf32>
    %389 = vector.shape_cast %388 : vector<1x1x128xf32> to vector<128xf32>
    %390 = vector.shape_cast %389 : vector<128xf32> to vector<1x1x128xf32>
    %391 = vector.broadcast %390 : vector<1x1x128xf32> to vector<8x8x128xf32>
    %392 = arith.mulf %387, %391 : vector<8x8x128xf32>
    %393 = arith.addf %386, %392 : vector<8x8x128xf32>
    %c6_201 = arith.constant 6 : index
    %c6_202 = arith.constant 6 : index
    %c0_203 = arith.constant 0 : index
    %394 = vector.load %arg6[%c6_201, %c6_202, %c0_203] : memref<14x14x128xf32, #tpu.memory_space<vmem>>, vector<8x8x128xf32>
    %395 = vector.extract_strided_slice %53 {offsets = [6, 6, 0], sizes = [1, 1, 128], strides = [1, 1, 1]} : vector<7x7x128xf32> to vector<1x1x128xf32>
    %396 = vector.shape_cast %395 : vector<1x1x128xf32> to vector<128xf32>
    %397 = vector.shape_cast %396 : vector<128xf32> to vector<1x1x128xf32>
    %398 = vector.broadcast %397 : vector<1x1x128xf32> to vector<8x8x128xf32>
    %399 = arith.mulf %394, %398 : vector<8x8x128xf32>
    %400 = arith.addf %393, %399 : vector<8x8x128xf32>
    %401 = vector.extract_strided_slice %400 {offsets = [0, 0, 0], sizes = [1, 8, 128], strides = [1, 1, 1]} : vector<8x8x128xf32> to vector<1x8x128xf32>
    %402 = vector.shape_cast %401 : vector<1x8x128xf32> to vector<8x128xf32>
    %c0_204 = arith.constant 0 : index
    %c1_205 = arith.constant 1 : index
    %c0_206 = arith.constant 0 : index
    %403 = vector.load %arg5[%c0_204, %c1_205, %c0_206] : memref<1x65x128xf32, #tpu.memory_space<vmem>>, vector<1x8x128xf32>
    %404 = vector.shape_cast %403 : vector<1x8x128xf32> to vector<8x128xf32>
    %405 = vector.shape_cast %402 : vector<8x128xf32> to vector<1x8x128xf32>
    tpu.vector_store %arg5[%c0_204, %c1_205, %c0_206], %405 {strides = array<i32>} : memref<1x65x128xf32, #tpu.memory_space<vmem>>, vector<1x8x128xf32>,
    %406 = vector.extract_strided_slice %400 {offsets = [1, 0, 0], sizes = [1, 8, 128], strides = [1, 1, 1]} : vector<8x8x128xf32> to vector<1x8x128xf32>
    %407 = vector.shape_cast %406 : vector<1x8x128xf32> to vector<8x128xf32>
    %c0_207 = arith.constant 0 : index
    %c9_208 = arith.constant 9 : index
    %c0_209 = arith.constant 0 : index
    %408 = vector.load %arg5[%c0_207, %c9_208, %c0_209] : memref<1x65x128xf32, #tpu.memory_space<vmem>>, vector<1x8x128xf32>
    %409 = vector.shape_cast %408 : vector<1x8x128xf32> to vector<8x128xf32>
    %410 = vector.shape_cast %407 : vector<8x128xf32> to vector<1x8x128xf32>
    tpu.vector_store %arg5[%c0_207, %c9_208, %c0_209], %410 {strides = array<i32>} : memref<1x65x128xf32, #tpu.memory_space<vmem>>, vector<1x8x128xf32>,
    %411 = vector.extract_strided_slice %400 {offsets = [2, 0, 0], sizes = [1, 8, 128], strides = [1, 1, 1]} : vector<8x8x128xf32> to vector<1x8x128xf32>
    %412 = vector.shape_cast %411 : vector<1x8x128xf32> to vector<8x128xf32>
    %c0_210 = arith.constant 0 : index
    %c17_211 = arith.constant 17 : index
    %c0_212 = arith.constant 0 : index
    %413 = vector.load %arg5[%c0_210, %c17_211, %c0_212] : memref<1x65x128xf32, #tpu.memory_space<vmem>>, vector<1x8x128xf32>
    %414 = vector.shape_cast %413 : vector<1x8x128xf32> to vector<8x128xf32>
    %415 = vector.shape_cast %412 : vector<8x128xf32> to vector<1x8x128xf32>
    tpu.vector_store %arg5[%c0_210, %c17_211, %c0_212], %415 {strides = array<i32>} : memref<1x65x128xf32, #tpu.memory_space<vmem>>, vector<1x8x128xf32>,
    %416 = vector.extract_strided_slice %400 {offsets = [3, 0, 0], sizes = [1, 8, 128], strides = [1, 1, 1]} : vector<8x8x128xf32> to vector<1x8x128xf32>
    %417 = vector.shape_cast %416 : vector<1x8x128xf32> to vector<8x128xf32>
    %c0_213 = arith.constant 0 : index
    %c25_214 = arith.constant 25 : index
    %c0_215 = arith.constant 0 : index
    %418 = vector.load %arg5[%c0_213, %c25_214, %c0_215] : memref<1x65x128xf32, #tpu.memory_space<vmem>>, vector<1x8x128xf32>
    %419 = vector.shape_cast %418 : vector<1x8x128xf32> to vector<8x128xf32>
    %420 = vector.shape_cast %417 : vector<8x128xf32> to vector<1x8x128xf32>
    tpu.vector_store %arg5[%c0_213, %c25_214, %c0_215], %420 {strides = array<i32>} : memref<1x65x128xf32, #tpu.memory_space<vmem>>, vector<1x8x128xf32>,
    %421 = vector.extract_strided_slice %400 {offsets = [4, 0, 0], sizes = [1, 8, 128], strides = [1, 1, 1]} : vector<8x8x128xf32> to vector<1x8x128xf32>
    %422 = vector.shape_cast %421 : vector<1x8x128xf32> to vector<8x128xf32>
    %c0_216 = arith.constant 0 : index
    %c33_217 = arith.constant 33 : index
    %c0_218 = arith.constant 0 : index
    %423 = vector.load %arg5[%c0_216, %c33_217, %c0_218] : memref<1x65x128xf32, #tpu.memory_space<vmem>>, vector<1x8x128xf32>
    %424 = vector.shape_cast %423 : vector<1x8x128xf32> to vector<8x128xf32>
    %425 = vector.shape_cast %422 : vector<8x128xf32> to vector<1x8x128xf32>
    tpu.vector_store %arg5[%c0_216, %c33_217, %c0_218], %425 {strides = array<i32>} : memref<1x65x128xf32, #tpu.memory_space<vmem>>, vector<1x8x128xf32>,
    %426 = vector.extract_strided_slice %400 {offsets = [5, 0, 0], sizes = [1, 8, 128], strides = [1, 1, 1]} : vector<8x8x128xf32> to vector<1x8x128xf32>
    %427 = vector.shape_cast %426 : vector<1x8x128xf32> to vector<8x128xf32>
    %c0_219 = arith.constant 0 : index
    %c41_220 = arith.constant 41 : index
    %c0_221 = arith.constant 0 : index
    %428 = vector.load %arg5[%c0_219, %c41_220, %c0_221] : memref<1x65x128xf32, #tpu.memory_space<vmem>>, vector<1x8x128xf32>
    %429 = vector.shape_cast %428 : vector<1x8x128xf32> to vector<8x128xf32>
    %430 = vector.shape_cast %427 : vector<8x128xf32> to vector<1x8x128xf32>
    tpu.vector_store %arg5[%c0_219, %c41_220, %c0_221], %430 {strides = array<i32>} : memref<1x65x128xf32, #tpu.memory_space<vmem>>, vector<1x8x128xf32>,
    %431 = vector.extract_strided_slice %400 {offsets = [6, 0, 0], sizes = [1, 8, 128], strides = [1, 1, 1]} : vector<8x8x128xf32> to vector<1x8x128xf32>
    %432 = vector.shape_cast %431 : vector<1x8x128xf32> to vector<8x128xf32>
    %c0_222 = arith.constant 0 : index
    %c49_223 = arith.constant 49 : index
    %c0_224 = arith.constant 0 : index
    %433 = vector.load %arg5[%c0_222, %c49_223, %c0_224] : memref<1x65x128xf32, #tpu.memory_space<vmem>>, vector<1x8x128xf32>
    %434 = vector.shape_cast %433 : vector<1x8x128xf32> to vector<8x128xf32>
    %435 = vector.shape_cast %432 : vector<8x128xf32> to vector<1x8x128xf32>
    tpu.vector_store %arg5[%c0_222, %c49_223, %c0_224], %435 {strides = array<i32>} : memref<1x65x128xf32, #tpu.memory_space<vmem>>, vector<1x8x128xf32>,
    %436 = vector.extract_strided_slice %400 {offsets = [7, 0, 0], sizes = [1, 8, 128], strides = [1, 1, 1]} : vector<8x8x128xf32> to vector<1x8x128xf32>
    %437 = vector.shape_cast %436 : vector<1x8x128xf32> to vector<8x128xf32>
    %c0_225 = arith.constant 0 : index
    %c57_226 = arith.constant 57 : index
    %c0_227 = arith.constant 0 : index
    %438 = vector.load %arg5[%c0_225, %c57_226, %c0_227] : memref<1x65x128xf32, #tpu.memory_space<vmem>>, vector<1x8x128xf32>
    %439 = vector.shape_cast %438 : vector<1x8x128xf32> to vector<8x128xf32>
    %440 = vector.shape_cast %437 : vector<8x128xf32> to vector<1x8x128xf32>
    tpu.vector_store %arg5[%c0_225, %c57_226, %c0_227], %440 {strides = array<i32>} : memref<1x65x128xf32, #tpu.memory_space<vmem>>, vector<1x8x128xf32>,
    return
  }
  func.func @transform_0(%arg0: i32, %arg1: i32) -> (i32, i32, i32) {
    %c0_i32 = arith.constant 0 : i32
    %c0_i32_0 = arith.constant 0 : i32
    return %arg0, %c0_i32, %arg1 : i32, i32, i32
  }
  func.func @transform_1(%arg0: i32, %arg1: i32) -> (i32, i32, i32) {
    %c0_i32 = arith.constant 0 : i32
    %c0_i32_0 = arith.constant 0 : i32
    %c0_i32_1 = arith.constant 0 : i32
    return %c0_i32, %c0_i32_0, %arg1 : i32, i32, i32
  }
  func.func @transform_2(%arg0: i32, %arg1: i32) -> (i32, i32, i32) {
    %c0_i32 = arith.constant 0 : i32
    %c0_i32_0 = arith.constant 0 : i32
    %c0_i32_1 = arith.constant 0 : i32
    return %c0_i32, %c0_i32_0, %arg1 : i32, i32, i32
  }
  func.func @transform_3(%arg0: i32, %arg1: i32) -> (i32, i32, i32) {
    %c0_i32 = arith.constant 0 : i32
    %c0_i32_0 = arith.constant 0 : i32
    return %arg0, %c0_i32, %arg1 : i32, i32, i32
  }
}

</mosaic_0001>

<llo_original>
// kernel: tpu_custom_call.1
$region0: #{tpu_custom_call.1}
  #allocation0 [shape = 'u32[]', space=smem, size = 0x4, offset = 0x4, fixed_abs, tag = 'smem constant byte address 0x4 - core index']
  #allocation1 [shape = 'u32[144,128]{1,0:T(1,128)}', space=vmem, size = 0x12000, scoped, tag = 'internal scratch']
  #allocation2 [shape = 'f32[14,14,128]{2,1,0:T(8,128)}', space=vmem, size = 0x1c000, scoped, tag = 'scratch operand']
  %s0 = inlined_call_operand.vmem [shape: f32[2,65,128], index: 0, kind: input, shape index: {}]
  %s1 = inlined_call_operand.vmem [shape: f32[7,7,128], index: 1, kind: input, shape index: {}]
  %s2 = inlined_call_operand.vmem [shape: f32[1,1,128], index: 2, kind: input, shape index: {}]
  %s3 = inlined_call_operand.vmem [shape: f32[2,65,128], index: 3, kind: output, shape index: {}]
  %s4 = sld [smem:[#allocation0]]
  $region45: #{tpu_custom_call.1} parent=0
    _
  %s6 = ssub.s32 1, %s4
  %s7 = scalar_select 0, %s6, %s4
  loop: start=0, step=1, limit=4
  $region2: #{tpu_custom_call.1} parent=0 // loop_pre_header
    _
  $region3: #{tpu_custom_call.1} parent=0 // loop_header
    %s9 = sphi 0, %s13
    %p10 = scmp.ge.s32.totalorder %s9, 4
    %s16 = sphi 0, %s28
    %s17 = sphi 0, %s24
    %s18 = sphi 0, %s16
    %s19 = sphi 0, %s17
    %s20 = sphi 0, %s18
    %s21 = sphi 0, %s19
    %s33 = sphi 0, %s35
    %s36 = sphi 0, %s33
    %s37 = sphi 0, %s36
    %s53 = sphi 0, %s37
    %s59 = sphi 0, %s61
    %s62 = sphi 0, %s59
    %s63 = sphi 0, %s62
    %s79 = sphi 0, %s63
    %s85 = sphi 0, %s87
    %s88 = sphi 0, %s85
    %s89 = sphi 0, %s88
    %s105 = sphi 0, %s89
    %s113 = sphi 0, %s115
    %s116 = sphi 0, %s113
    %s117 = sphi 0, %s116
    %s133 = sphi 0, %s117
  $region4: #{tpu_custom_call.1} parent=0 // loop_header_branch
    %12 = sbr.rel (%p10) target = $region8
  $region5: #{tpu_custom_call.1} parent=0 // loop_body
    %s14 = ssub.s32 %s9, 1
    %s15 = ssub.s32 %s9, 2
    %s22 = sadd.s32 1, %s17
    %p23 = scmp.ge.s32.totalorder %s22, 1
    %s24 = scalar_select %p23, 0, %s22
    %s25 = sadd.s32 1, %s16
    %s26 = scalar_select %p23, %s25, %s16
    %p27 = scmp.ge.s32.totalorder %s26, 2
    %s28 = scalar_select %p27, 0, %s26
    %s29 = ssub.s32 %s16, %s28
    %s30 = ssub.s32 %s17, %s24
    %s31 = sor.u32 %s29, %s30
    %p32 = scmp.eq.s32.totalorder %s31, 0
    %s34 = sadd.s32 %s33, 1
    %s35 = scalar_select %p32, %s33, %s34
    %p38 = pneg %p32
    %p39 = scmp.eq.s32.totalorder %s9, 1
    %p40 = por %p38, %p39
    %p41 = scmp.ne.s32.totalorder %s33, %s36
    %p42 = scmp.eq.s32.totalorder %s9, 0
    %p43 = por %p41, %p42
    %p44 = scmp.ne.s32.totalorder %s33, %s36
    %p45 = scmp.eq.s32.totalorder %s14, 1
    %p46 = por %p44, %p45
    %p47 = scmp.ne.s32.totalorder %s36, %s37
    %p48 = scmp.eq.s32.totalorder %s14, 0
    %p49 = por %p47, %p48
    %p50 = scmp.ne.s32.totalorder %s36, %s37
    %p51 = scmp.eq.s32.totalorder %s15, 1
    %p52 = por %p50, %p51
    %p54 = scmp.ne.s32.totalorder %s37, %s53
    %p55 = scmp.eq.s32.totalorder %s15, 0
    %p56 = por %p54, %p55
    %s57 = ssub.s32 %s17, %s24
    %p58 = scmp.eq.s32.totalorder %s57, 0
    %s60 = sadd.s32 %s59, 1
    %s61 = scalar_select %p58, %s59, %s60
    %p64 = pneg %p58
    %p65 = scmp.eq.s32.totalorder %s9, 1
    %p66 = por %p64, %p65
    %p67 = scmp.ne.s32.totalorder %s59, %s62
    %p68 = scmp.eq.s32.totalorder %s9, 0
    %p69 = por %p67, %p68
    %p70 = scmp.ne.s32.totalorder %s59, %s62
    %p71 = scmp.eq.s32.totalorder %s14, 1
    %p72 = por %p70, %p71
    %p73 = scmp.ne.s32.totalorder %s62, %s63
    %p74 = scmp.eq.s32.totalorder %s14, 0
    %p75 = por %p73, %p74
    %p76 = scmp.ne.s32.totalorder %s62, %s63
    %p77 = scmp.eq.s32.totalorder %s15, 1
    %p78 = por %p76, %p77
    %p80 = scmp.ne.s32.totalorder %s63, %s79
    %p81 = scmp.eq.s32.totalorder %s15, 0
    %p82 = por %p80, %p81
    %s83 = ssub.s32 %s17, %s24
    %p84 = scmp.eq.s32.totalorder %s83, 0
    %s86 = sadd.s32 %s85, 1
    %s87 = scalar_select %p84, %s85, %s86
    %p90 = pneg %p84
    %p91 = scmp.eq.s32.totalorder %s9, 1
    %p92 = por %p90, %p91
    %p93 = scmp.ne.s32.totalorder %s85, %s88
    %p94 = scmp.eq.s32.totalorder %s9, 0
    %p95 = por %p93, %p94
    %p96 = scmp.ne.s32.totalorder %s85, %s88
    %p97 = scmp.eq.s32.totalorder %s14, 1
    %p98 = por %p96, %p97
    %p99 = scmp.ne.s32.totalorder %s88, %s89
    %p100 = scmp.eq.s32.totalorder %s14, 0
    %p101 = por %p99, %p100
    %p102 = scmp.ne.s32.totalorder %s88, %s89
    %p103 = scmp.eq.s32.totalorder %s15, 1
    %p104 = por %p102, %p103
    %p106 = scmp.ne.s32.totalorder %s89, %s105
    %p107 = scmp.eq.s32.totalorder %s15, 0
    %p108 = por %p106, %p107
    %s109 = ssub.s32 %s16, %s28
    %s110 = ssub.s32 %s17, %s24
    %s111 = sor.u32 %s109, %s110
    %p112 = scmp.eq.s32.totalorder %s111, 0
    %s114 = sadd.s32 %s113, 1
    %s115 = scalar_select %p112, %s113, %s114
    %p118 = pneg %p112
    %p119 = scmp.eq.s32.totalorder %s9, 1
    %p120 = por %p118, %p119
    %p121 = scmp.ne.s32.totalorder %s113, %s116
    %p122 = scmp.eq.s32.totalorder %s9, 0
    %p123 = por %p121, %p122
    %p124 = scmp.ne.s32.totalorder %s113, %s116
    %p125 = scmp.eq.s32.totalorder %s14, 1
    %p126 = por %p124, %p125
    %p127 = scmp.ne.s32.totalorder %s116, %s117
    %p128 = scmp.eq.s32.totalorder %s14, 0
    %p129 = por %p127, %p128
    %p130 = scmp.ne.s32.totalorder %s116, %s117
    %p131 = scmp.eq.s32.totalorder %s15, 1
    %p132 = por %p130, %p131
    %p134 = scmp.ne.s32.totalorder %s117, %s133
    %p135 = scmp.eq.s32.totalorder %s15, 0
    %p136 = por %p134, %p135
    %p137 = scmp.le.s32.totalorder 1, %s9
    %p138 = scmp.lt.s32.totalorder %s9, 3
    %p139 = pnand %p137, %p138
    %p140 = pneg %p139
    // Predicated region
    $region9: #{tpu_custom_call.1} parent=5 // pred_check
      _
    $region10: #{tpu_custom_call.1} parent=5 // pred_check_branch
      %142 = sbr.rel (%p139) target = $region12
    $region11: #{tpu_custom_call.1} parent=5 // pred_region
      %s143 = ssub.s32 %s9, 1
      // Predicated region
      $region13: #{tpu_custom_call.1} parent=11 // pred_check
        %p144 = pneg %p75
      $region14: #{tpu_custom_call.1} parent=11 // pred_check_branch
        %146 = sbr.rel (%p144) target = $region16
      $region15: #{tpu_custom_call.1} parent=11 // pred_region
        %p147 = scmp.lt.s32.totalorder %s19, 0
        %s148 = scalar_select %p147, %s19, 0
        %s149 = smul.addr %s148, 8
        %s150 = scalar_lea.vmem %s1, %s149
      $region16: #{tpu_custom_call.1} parent=11 // pred_fallthru
        _
      // Predicated region
      $region17: #{tpu_custom_call.1} parent=11 // pred_check
        %p151 = pneg %p101
      $region18: #{tpu_custom_call.1} parent=11 // pred_check_branch
        %153 = sbr.rel (%p151) target = $region20
      $region19: #{tpu_custom_call.1} parent=11 // pred_region
        %p154 = scmp.lt.s32.totalorder %s19, 0
        %s155 = scalar_select %p154, %s19, 0
        %s156 = scalar_lea.vmem %s2, %s155
      $region20: #{tpu_custom_call.1} parent=11 // pred_fallthru
        _
    $region12: #{tpu_custom_call.1} parent=5 // pred_fallthru
      _
    %p157 = scmp.lt.s32.totalorder %s9, 2
    // Predicated region
    $region21: #{tpu_custom_call.1} parent=5 // pred_check
      %p158 = pneg %p157
    $region22: #{tpu_custom_call.1} parent=5 // pred_check_branch
      %160 = sbr.rel (%p158) target = $region24
    $region23: #{tpu_custom_call.1} parent=5 // pred_region
      // Predicated region
      $region25: #{tpu_custom_call.1} parent=23 // pred_check
        %p161 = pneg %p43
      $region26: #{tpu_custom_call.1} parent=23 // pred_check_branch
        %163 = sbr.rel (%p161) target = $region28
      $region27: #{tpu_custom_call.1} parent=23 // pred_region
        %p164 = scmp.lt.s32.totalorder %s16, 1
        %s165 = scalar_select %p164, %s16, 1
        %p166 = scmp.lt.s32.totalorder %s17, 0
        %s167 = scalar_select %p166, %s17, 0
        %s168 = smul.addr %s165, 9
        %s169 = sadd.s32 %s167, %s168
        %s170 = smul.addr %s169, 8
        %s171 = scalar_lea.vmem %s0, %s170
      $region28: #{tpu_custom_call.1} parent=23 // pred_fallthru
        _
    $region24: #{tpu_custom_call.1} parent=5 // pred_fallthru
      _
    %p172 = scmp.le.s32.totalorder 1, %s9
    %p173 = scmp.lt.s32.totalorder %s9, 3
    %p174 = pnand %p172, %p173
    %p175 = pneg %p174
    // Predicated region
    $region29: #{tpu_custom_call.1} parent=5 // pred_check
      _
    $region30: #{tpu_custom_call.1} parent=5 // pred_check_branch
      %177 = sbr.rel (%p174) target = $region32
    $region31: #{tpu_custom_call.1} parent=5 // pred_region
      %s178 = ssub.s32 %s9, 1
      %p179 = scmp.lt.s32.totalorder %s18, 1
      %s180 = scalar_select %p179, %s18, 1
      %p181 = scmp.lt.s32.totalorder %s19, 0
      %s182 = scalar_select %p181, %s19, 0
      %s183 = smul.addr %s180, 9
      %s184 = sadd.s32 %s182, %s183
      %s185 = smul.addr %s184, 8
      %s186 = scalar_lea.vmem %s0, %s185
      %p187 = pneg %p49
      %p188 = pneg %p46
      %p189 = scmp.lt.s32.totalorder %s19, 0
      %s190 = scalar_select %p189, %s19, 0
      %s191 = smul.addr %s190, 8
      %s192 = scalar_lea.vmem %s1, %s191
      %p193 = pneg %p75
      %p194 = pneg %p72
      %p195 = scmp.lt.s32.totalorder %s19, 0
      %s196 = scalar_select %p195, %s19, 0
      %s197 = scalar_lea.vmem %s2, %s196
      %p198 = pneg %p101
      %p199 = pneg %p98
      %p200 = pneg %p129
      %p201 = pneg %p126
      %p202 = scmp.lt.s32.totalorder %s18, 1
      %s203 = scalar_select %p202, %s18, 1
      %p204 = scmp.lt.s32.totalorder %s19, 0
      %s205 = scalar_select %p204, %s19, 0
      %s206 = smul.addr %s203, 9
      %s207 = sadd.s32 %s205, %s206
      %s208 = smul.addr %s207, 8
      %s209 = scalar_lea.vmem %s3, %s208
      %p210 = scmp.lt.s32.totalorder %s18, 1
      %s211 = scalar_select %p210, %s18, 1
      %p212 = scmp.lt.s32.totalorder %s19, 0
      %s213 = scalar_select %p212, %s19, 0
      %s214 = smul.addr %s211, 9
      %s215 = sadd.s32 %s213, %s214
      %s216 = smul.addr %s215, 8
      %s217 = scalar_lea.vmem %s0, %s216
      %p218 = scmp.lt.s32.totalorder %s19, 0
      %s219 = scalar_select %p218, %s19, 0
      %s220 = smul.addr %s219, 8
      %s221 = scalar_lea.vmem %s1, %s220
      %p222 = scmp.lt.s32.totalorder %s19, 0
      %s223 = scalar_select %p222, %s19, 0
      %s224 = scalar_lea.vmem %s2, %s223
      %p225 = scmp.lt.s32.totalorder %s18, 1
      %s226 = scalar_select %p225, %s18, 1
      %p227 = scmp.lt.s32.totalorder %s19, 0
      %s228 = scalar_select %p227, %s19, 0
      %s229 = smul.addr %s226, 9
      %s230 = sadd.s32 %s228, %s229
      %s231 = smul.addr %s230, 8
      %s232 = scalar_lea.vmem %s3, %s231
      %v233 = vld [vmem:[%s217] sm:$0x1]
      %234 = vst [vmem:[%s232] sm:$0x1] %v233
      %235 = vst [vmem:[#allocation2] sm:$0xff] 0.0
      %236 = vst [vmem:[#allocation2 + $0x8] sm:$0x3f] 0.0
      %237 = vst [vmem:[#allocation2 + $0x10] sm:$0xff] 0.0
      %238 = vst [vmem:[#allocation2 + $0x18] sm:$0x3f] 0.0
      %239 = vst [vmem:[#allocation2 + $0x20] sm:$0xff] 0.0
      %240 = vst [vmem:[#allocation2 + $0x28] sm:$0x3f] 0.0
      %s241 = scalar_lea.vmem [#allocation2], 176
      %242 = vst [vmem:[%s241] sm:$0xff] 0.0
      %243 = vst [vmem:[%s241 + $0x8] sm:$0x3f] 0.0
      %244 = vst [vmem:[%s241 + $0x10] sm:$0xff] 0.0
      %245 = vst [vmem:[%s241 + $0x18] sm:$0x3f] 0.0
      %246 = vst [vmem:[%s241 + $0x20] sm:$0xff] 0.0
      %247 = vst [vmem:[%s241 + $0x28] sm:$0x3f] 0.0
      %s248 = scalar_lea.vmem [#allocation2], 48
      %249 = vst [vmem:[%s248] sm:$0x7] 0.0
      %250 = vst [vmem:[%s248 + $0x10] sm:$0x7] 0.0
      %251 = vst [vmem:[%s248 + $0x20] sm:$0x7] 0.0
      %252 = vst [vmem:[%s248 + $0x30] sm:$0x7] 0.0
      %253 = vst [vmem:[%s248 + $0x40] sm:$0x7] 0.0
      %254 = vst [vmem:[%s248 + $0x50] sm:$0x7] 0.0
      %255 = vst [vmem:[%s248 + $0x60] sm:$0x7] 0.0
      %256 = vst [vmem:[%s248 + $0x70] sm:$0x7] 0.0
      %257 = vst [vmem:[%s248 + $0xb] sm:$0x7] 0.0
      %258 = vst [vmem:[%s248 + $0x1b] sm:$0x7] 0.0
      %259 = vst [vmem:[%s248 + $0x2b] sm:$0x7] 0.0
      %260 = vst [vmem:[%s248 + $0x3b] sm:$0x7] 0.0
      %261 = vst [vmem:[%s248 + $0x4b] sm:$0x7] 0.0
      %262 = vst [vmem:[%s248 + $0x5b] sm:$0x7] 0.0
      %263 = vst [vmem:[%s248 + $0x6b] sm:$0x7] 0.0
      %264 = vst [vmem:[%s248 + $0x7b] sm:$0x7] 0.0
      %v265 = vld [vmem:[%s217 + $0x1] sm:$0xff]
      %266 = vst [vmem:[%s248 + $0x3] sm:$0xff] %v265
      %v267 = vld [vmem:[%s217 + $0x9] sm:$0xff]
      %s268 = scalar_lea.vmem [#allocation2], 64
      %269 = vst [vmem:[%s268 + $0x3] sm:$0xff] %v267
      %v270 = vld [vmem:[%s217 + $0x11] sm:$0xff]
      %s271 = scalar_lea.vmem [#allocation2], 80
      %272 = vst [vmem:[%s271 + $0x3] sm:$0xff] %v270
      %v273 = vld [vmem:[%s217 + $0x19] sm:$0xff]
      %s274 = scalar_lea.vmem [#allocation2], 96
      %275 = vst [vmem:[%s274 + $0x3] sm:$0xff] %v273
      %v276 = vld [vmem:[%s217 + $0x21] sm:$0xff]
      %s277 = scalar_lea.vmem [#allocation2], 112
      %278 = vst [vmem:[%s277 + $0x3] sm:$0xff] %v276
      %v279 = vld [vmem:[%s217 + $0x29] sm:$0xff]
      %s280 = scalar_lea.vmem [#allocation2], 128
      %281 = vst [vmem:[%s280 + $0x3] sm:$0xff] %v279
      %v282 = vld [vmem:[%s217 + $0x31] sm:$0xff]
      %s283 = scalar_lea.vmem [#allocation2], 144
      %284 = vst [vmem:[%s283 + $0x3] sm:$0xff] %v282
      %v285 = vld [vmem:[%s217 + $0x39] sm:$0xff]
      %s286 = scalar_lea.vmem [#allocation2], 160
      %287 = vst [vmem:[%s286 + $0x3] sm:$0xff] %v285
      %v288 = vld [vmem:[%s221] sm:$0x7f]
      %v289 = vld [vmem:[%s221 + $0x8] sm:$0x7f]
      %v290 = vld [vmem:[%s221 + $0x10] sm:$0x7f]
      %v291 = vld [vmem:[%s221 + $0x18] sm:$0x7f]
      %v292 = vld [vmem:[%s221 + $0x20] sm:$0x7f]
      %v293 = vld [vmem:[%s221 + $0x28] sm:$0x7f]
      %v294 = vld [vmem:[%s221 + $0x30] sm:$0x7f]
      %v295 = vld [vmem:[%s224] sm:$0x1]
      %v297 = vlaneseq
      %v298 = vshrl.u32 %v297, 7
      %v299 = vsub.s32 0, %v298
      %v300 = vrot.slane %v295, %v299
      %v302 = vld [vmem:[#allocation2] sm:$0xff]
      %v303 = vld [vmem:[#allocation2 + $0x10] sm:$0xff]
      %v304 = vld [vmem:[#allocation2 + $0x20] sm:$0xff]
      %v305 = vld [vmem:[#allocation2 + $0x30] sm:$0xff]
      %v306 = vld [vmem:[#allocation2 + $0x40] sm:$0xff]
      %v307 = vld [vmem:[#allocation2 + $0x50] sm:$0xff]
      %v308 = vld [vmem:[#allocation2 + $0x60] sm:$0xff]
      %v309 = vld [vmem:[#allocation2 + $0x70] sm:$0xff]
      %v310 = vlaneseq
      %v311 = vshrl.u32 %v310, 7
      %v312 = vsub.s32 0, %v311
      %v313 = vrot.slane %v288, %v312
      %v314 = vmul.f32 %v302, %v313
      %v315 = vmul.f32 %v303, %v313
      %v316 = vmul.f32 %v304, %v313
      %v317 = vmul.f32 %v305, %v313
      %v318 = vmul.f32 %v306, %v313
      %v319 = vmul.f32 %v307, %v313
      %v320 = vmul.f32 %v308, %v313
      %v321 = vmul.f32 %v309, %v313
      %v322 = vadd.f32 %v300, %v314
      %v323 = vadd.f32 %v300, %v315
      %v324 = vadd.f32 %v300, %v316
      %v325 = vadd.f32 %v300, %v317
      %v326 = vadd.f32 %v300, %v318
      %v327 = vadd.f32 %v300, %v319
      %v328 = vadd.f32 %v300, %v320
      %v329 = vadd.f32 %v300, %v321
      %v330 = vld [vmem:[#allocation2 + $0x1] sm:$0xff]
      %v331 = vld [vmem:[#allocation2 + $0x11] sm:$0xff]
      %v332 = vld [vmem:[#allocation2 + $0x21] sm:$0xff]
      %v333 = vld [vmem:[#allocation2 + $0x31] sm:$0xff]
      %v334 = vld [vmem:[#allocation2 + $0x41] sm:$0xff]
      %v335 = vld [vmem:[#allocation2 + $0x51] sm:$0xff]
      %v336 = vld [vmem:[#allocation2 + $0x61] sm:$0xff]
      %v337 = vld [vmem:[#allocation2 + $0x71] sm:$0xff]
      %v338 = vlaneseq
      %v339 = vshrl.u32 %v338, 7
      %v340 = vsub.s32 1, %v339
      %v341 = vrot.slane %v288, %v340
      %v342 = vmul.f32 %v330, %v341
      %v343 = vmul.f32 %v331, %v341
      %v344 = vmul.f32 %v332, %v341
      %v345 = vmul.f32 %v333, %v341
      %v346 = vmul.f32 %v334, %v341
      %v347 = vmul.f32 %v335, %v341
      %v348 = vmul.f32 %v336, %v341
      %v349 = vmul.f32 %v337, %v341
      %v350 = vadd.f32 %v322, %v342
      %v351 = vadd.f32 %v323, %v343
      %v352 = vadd.f32 %v324, %v344
      %v353 = vadd.f32 %v325, %v345
      %v354 = vadd.f32 %v326, %v346
      %v355 = vadd.f32 %v327, %v347
      %v356 = vadd.f32 %v328, %v348
      %v357 = vadd.f32 %v329, %v349
      %v358 = vld [vmem:[#allocation2 + $0x2] sm:$0xff]
      %v359 = vld [vmem:[#allocation2 + $0x12] sm:$0xff]
      %v360 = vld [vmem:[#allocation2 + $0x22] sm:$0xff]
      %v361 = vld [vmem:[#allocation2 + $0x32] sm:$0xff]
      %v362 = vld [vmem:[#allocation2 + $0x42] sm:$0xff]
      %v363 = vld [vmem:[#allocation2 + $0x52] sm:$0xff]
      %v364 = vld [vmem:[#allocation2 + $0x62] sm:$0xff]
      %v365 = vld [vmem:[#allocation2 + $0x72] sm:$0xff]
      %v366 = vlaneseq
      %v367 = vshrl.u32 %v366, 7
      %v368 = vsub.s32 2, %v367
      %v369 = vrot.slane %v288, %v368
      %v370 = vmul.f32 %v358, %v369
      %v371 = vmul.f32 %v359, %v369
      %v372 = vmul.f32 %v360, %v369
      %v373 = vmul.f32 %v361, %v369
      %v374 = vmul.f32 %v362, %v369
      %v375 = vmul.f32 %v363, %v369
      %v376 = vmul.f32 %v364, %v369
      %v377 = vmul.f32 %v365, %v369
      %v378 = vadd.f32 %v350, %v370
      %v379 = vadd.f32 %v351, %v371
      %v380 = vadd.f32 %v352, %v372
      %v381 = vadd.f32 %v353, %v373
      %v382 = vadd.f32 %v354, %v374
      %v383 = vadd.f32 %v355, %v375
      %v384 = vadd.f32 %v356, %v376
      %v385 = vadd.f32 %v357, %v377
      %v386 = vld [vmem:[#allocation2 + $0x3] sm:$0xff]
      %v387 = vld [vmem:[#allocation2 + $0x13] sm:$0xff]
      %v388 = vld [vmem:[#allocation2 + $0x23] sm:$0xff]
      %v389 = vld [vmem:[#allocation2 + $0x33] sm:$0xff]
      %v390 = vld [vmem:[#allocation2 + $0x43] sm:$0xff]
      %v391 = vld [vmem:[#allocation2 + $0x53] sm:$0xff]
      %v392 = vld [vmem:[#allocation2 + $0x63] sm:$0xff]
      %v393 = vld [vmem:[#allocation2 + $0x73] sm:$0xff]
      %v394 = vlaneseq
      %v395 = vshrl.u32 %v394, 7
      %v396 = vsub.s32 3, %v395
      %v397 = vrot.slane %v288, %v396
      %v398 = vmul.f32 %v386, %v397
      %v399 = vmul.f32 %v387, %v397
      %v400 = vmul.f32 %v388, %v397
      %v401 = vmul.f32 %v389, %v397
      %v402 = vmul.f32 %v390, %v397
      %v403 = vmul.f32 %v391, %v397
      %v404 = vmul.f32 %v392, %v397
      %v405 = vmul.f32 %v393, %v397
      %v406 = vadd.f32 %v378, %v398
      %v407 = vadd.f32 %v379, %v399
      %v408 = vadd.f32 %v380, %v400
      %v409 = vadd.f32 %v381, %v401
      %v410 = vadd.f32 %v382, %v402
      %v411 = vadd.f32 %v383, %v403
      %v412 = vadd.f32 %v384, %v404
      %v413 = vadd.f32 %v385, %v405
      %v414 = vld [vmem:[#allocation2 + $0x4] sm:$0xff]
      %v415 = vld [vmem:[#allocation2 + $0x14] sm:$0xff]
      %v416 = vld [vmem:[#allocation2 + $0x24] sm:$0xff]
      %v417 = vld [vmem:[#allocation2 + $0x34] sm:$0xff]
      %v418 = vld [vmem:[#allocation2 + $0x44] sm:$0xff]
      %v419 = vld [vmem:[#allocation2 + $0x54] sm:$0xff]
      %v420 = vld [vmem:[#allocation2 + $0x64] sm:$0xff]
      %v421 = vld [vmem:[#allocation2 + $0x74] sm:$0xff]
      %v422 = vlaneseq
      %v423 = vshrl.u32 %v422, 7
      %v424 = vsub.s32 4, %v423
      %v425 = vrot.slane %v288, %v424
      %v426 = vmul.f32 %v414, %v425
      %v427 = vmul.f32 %v415, %v425
      %v428 = vmul.f32 %v416, %v425
      %v429 = vmul.f32 %v417, %v425
      %v430 = vmul.f32 %v418, %v425
      %v431 = vmul.f32 %v419, %v425
      %v432 = vmul.f32 %v420, %v425
      %v433 = vmul.f32 %v421, %v425
      %v434 = vadd.f32 %v406, %v426
      %v435 = vadd.f32 %v407, %v427
      %v436 = vadd.f32 %v408, %v428
      %v437 = vadd.f32 %v409, %v429
      %v438 = vadd.f32 %v410, %v430
      %v439 = vadd.f32 %v411, %v431
      %v440 = vadd.f32 %v412, %v432
      %v441 = vadd.f32 %v413, %v433
      %v442 = vld [vmem:[#allocation2 + $0x5] sm:$0xff]
      %v443 = vld [vmem:[#allocation2 + $0x15] sm:$0xff]
      %v444 = vld [vmem:[#allocation2 + $0x25] sm:$0xff]
      %v445 = vld [vmem:[#allocation2 + $0x35] sm:$0xff]
      %v446 = vld [vmem:[#allocation2 + $0x45] sm:$0xff]
      %v447 = vld [vmem:[#allocation2 + $0x55] sm:$0xff]
      %v448 = vld [vmem:[#allocation2 + $0x65] sm:$0xff]
      %v449 = vld [vmem:[#allocation2 + $0x75] sm:$0xff]
      %v450 = vlaneseq
      %v451 = vshrl.u32 %v450, 7
      %v452 = vsub.s32 5, %v451
      %v453 = vrot.slane %v288, %v452
      %v454 = vmul.f32 %v442, %v453
      %v455 = vmul.f32 %v443, %v453
      %v456 = vmul.f32 %v444, %v453
      %v457 = vmul.f32 %v445, %v453
      %v458 = vmul.f32 %v446, %v453
      %v459 = vmul.f32 %v447, %v453
      %v460 = vmul.f32 %v448, %v453
      %v461 = vmul.f32 %v449, %v453
      %v462 = vadd.f32 %v434, %v454
      %v463 = vadd.f32 %v435, %v455
      %v464 = vadd.f32 %v436, %v456
      %v465 = vadd.f32 %v437, %v457
      %v466 = vadd.f32 %v438, %v458
      %v467 = vadd.f32 %v439, %v459
      %v468 = vadd.f32 %v440, %v460
      %v469 = vadd.f32 %v441, %v461
      %v470 = vld [vmem:[#allocation2 + $0x6] sm:$0xff]
      %v471 = vld [vmem:[#allocation2 + $0x16] sm:$0xff]
      %v472 = vld [vmem:[#allocation2 + $0x26] sm:$0xff]
      %v473 = vld [vmem:[#allocation2 + $0x36] sm:$0xff]
      %v474 = vld [vmem:[#allocation2 + $0x46] sm:$0xff]
      %v475 = vld [vmem:[#allocation2 + $0x56] sm:$0xff]
      %v476 = vld [vmem:[#allocation2 + $0x66] sm:$0xff]
      %v477 = vld [vmem:[#allocation2 + $0x76] sm:$0xff]
      %v478 = vlaneseq
      %v479 = vshrl.u32 %v478, 7
      %v480 = vsub.s32 6, %v479
      %v481 = vrot.slane %v288, %v480
      %v482 = vmul.f32 %v470, %v481
      %v483 = vmul.f32 %v471, %v481
      %v484 = vmul.f32 %v472, %v481
      %v485 = vmul.f32 %v473, %v481
      %v486 = vmul.f32 %v474, %v481
      %v487 = vmul.f32 %v475, %v481
      %v488 = vmul.f32 %v476, %v481
      %v489 = vmul.f32 %v477, %v481
      %v490 = vadd.f32 %v462, %v482
      %v491 = vadd.f32 %v463, %v483
      %v492 = vadd.f32 %v464, %v484
      %v493 = vadd.f32 %v465, %v485
      %v494 = vadd.f32 %v466, %v486
      %v495 = vadd.f32 %v467, %v487
      %v496 = vadd.f32 %v468, %v488
      %v497 = vadd.f32 %v469, %v489
      %s498 = scalar_lea.vmem [#allocation2], 16
      %v499 = vld [vmem:[%s498] sm:$0xff]
      %v500 = vld [vmem:[%s498 + $0x10] sm:$0xff]
      %v501 = vld [vmem:[%s498 + $0x20] sm:$0xff]
      %v502 = vld [vmem:[%s498 + $0x30] sm:$0xff]
      %v503 = vld [vmem:[%s498 + $0x40] sm:$0xff]
      %v504 = vld [vmem:[%s498 + $0x50] sm:$0xff]
      %v505 = vld [vmem:[%s498 + $0x60] sm:$0xff]
      %v506 = vld [vmem:[%s498 + $0x70] sm:$0xff]
      %v507 = vlaneseq
      %v508 = vshrl.u32 %v507, 7
      %v509 = vsub.s32 0, %v508
      %v510 = vrot.slane %v289, %v509
      %v511 = vmul.f32 %v499, %v510
      %v512 = vmul.f32 %v500, %v510
      %v513 = vmul.f32 %v501, %v510
      %v514 = vmul.f32 %v502, %v510
      %v515 = vmul.f32 %v503, %v510
      %v516 = vmul.f32 %v504, %v510
      %v517 = vmul.f32 %v505, %v510
      %v518 = vmul.f32 %v506, %v510
      %v519 = vadd.f32 %v490, %v511
      %v520 = vadd.f32 %v491, %v512
      %v521 = vadd.f32 %v492, %v513
      %v522 = vadd.f32 %v493, %v514
      %v523 = vadd.f32 %v494, %v515
      %v524 = vadd.f32 %v495, %v516
      %v525 = vadd.f32 %v496, %v517
      %v526 = vadd.f32 %v497, %v518
      %v527 = vld [vmem:[%s498 + $0x1] sm:$0xff]
      %v528 = vld [vmem:[%s498 + $0x11] sm:$0xff]
      %v529 = vld [vmem:[%s498 + $0x21] sm:$0xff]
      %v530 = vld [vmem:[%s498 + $0x31] sm:$0xff]
      %v531 = vld [vmem:[%s498 + $0x41] sm:$0xff]
      %v532 = vld [vmem:[%s498 + $0x51] sm:$0xff]
      %v533 = vld [vmem:[%s498 + $0x61] sm:$0xff]
      %v534 = vld [vmem:[%s498 + $0x71] sm:$0xff]
      %v535 = vlaneseq
      %v536 = vshrl.u32 %v535, 7
      %v537 = vsub.s32 1, %v536
      %v538 = vrot.slane %v289, %v537
      %v539 = vmul.f32 %v527, %v538
      %v540 = vmul.f32 %v528, %v538
      %v541 = vmul.f32 %v529, %v538
      %v542 = vmul.f32 %v530, %v538
      %v543 = vmul.f32 %v531, %v538
      %v544 = vmul.f32 %v532, %v538
      %v545 = vmul.f32 %v533, %v538
      %v546 = vmul.f32 %v534, %v538
      %v547 = vadd.f32 %v519, %v539
      %v548 = vadd.f32 %v520, %v540
      %v549 = vadd.f32 %v521, %v541
      %v550 = vadd.f32 %v522, %v542
      %v551 = vadd.f32 %v523, %v543
      %v552 = vadd.f32 %v524, %v544
      %v553 = vadd.f32 %v525, %v545
      %v554 = vadd.f32 %v526, %v546
      %v555 = vld [vmem:[%s498 + $0x2] sm:$0xff]
      %v556 = vld [vmem:[%s498 + $0x12] sm:$0xff]
      %v557 = vld [vmem:[%s498 + $0x22] sm:$0xff]
      %v558 = vld [vmem:[%s498 + $0x32] sm:$0xff]
      %v559 = vld [vmem:[%s498 + $0x42] sm:$0xff]
      %v560 = vld [vmem:[%s498 + $0x52] sm:$0xff]
      %v561 = vld [vmem:[%s498 + $0x62] sm:$0xff]
      %v562 = vld [vmem:[%s498 + $0x72] sm:$0xff]
      %v563 = vlaneseq
      %v564 = vshrl.u32 %v563, 7
      %v565 = vsub.s32 2, %v564
      %v566 = vrot.slane %v289, %v565
      %v567 = vmul.f32 %v555, %v566
      %v568 = vmul.f32 %v556, %v566
      %v569 = vmul.f32 %v557, %v566
      %v570 = vmul.f32 %v558, %v566
      %v571 = vmul.f32 %v559, %v566
      %v572 = vmul.f32 %v560, %v566
      %v573 = vmul.f32 %v561, %v566
      %v574 = vmul.f32 %v562, %v566
      %v575 = vadd.f32 %v547, %v567
      %v576 = vadd.f32 %v548, %v568
      %v577 = vadd.f32 %v549, %v569
      %v578 = vadd.f32 %v550, %v570
      %v579 = vadd.f32 %v551, %v571
      %v580 = vadd.f32 %v552, %v572
      %v581 = vadd.f32 %v553, %v573
      %v582 = vadd.f32 %v554, %v574
      %v583 = vld [vmem:[%s498 + $0x3] sm:$0xff]
      %v584 = vld [vmem:[%s498 + $0x13] sm:$0xff]
      %v585 = vld [vmem:[%s498 + $0x23] sm:$0xff]
      %v586 = vld [vmem:[%s498 + $0x33] sm:$0xff]
      %v587 = vld [vmem:[%s498 + $0x43] sm:$0xff]
      %v588 = vld [vmem:[%s498 + $0x53] sm:$0xff]
      %v589 = vld [vmem:[%s498 + $0x63] sm:$0xff]
      %v590 = vld [vmem:[%s498 + $0x73] sm:$0xff]
      %v591 = vlaneseq
      %v592 = vshrl.u32 %v591, 7
      %v593 = vsub.s32 3, %v592
      %v594 = vrot.slane %v289, %v593
      %v595 = vmul.f32 %v583, %v594
      %v596 = vmul.f32 %v584, %v594
      %v597 = vmul.f32 %v585, %v594
      %v598 = vmul.f32 %v586, %v594
      %v599 = vmul.f32 %v587, %v594
      %v600 = vmul.f32 %v588, %v594
      %v601 = vmul.f32 %v589, %v594
      %v602 = vmul.f32 %v590, %v594
      %v603 = vadd.f32 %v575, %v595
      %v604 = vadd.f32 %v576, %v596
      %v605 = vadd.f32 %v577, %v597
      %v606 = vadd.f32 %v578, %v598
      %v607 = vadd.f32 %v579, %v599
      %v608 = vadd.f32 %v580, %v600
      %v609 = vadd.f32 %v581, %v601
      %v610 = vadd.f32 %v582, %v602
      %v611 = vld [vmem:[%s498 + $0x4] sm:$0xff]
      %v612 = vld [vmem:[%s498 + $0x14] sm:$0xff]
      %v613 = vld [vmem:[%s498 + $0x24] sm:$0xff]
      %v614 = vld [vmem:[%s498 + $0x34] sm:$0xff]
      %v615 = vld [vmem:[%s498 + $0x44] sm:$0xff]
      %v616 = vld [vmem:[%s498 + $0x54] sm:$0xff]
      %v617 = vld [vmem:[%s498 + $0x64] sm:$0xff]
      %v618 = vld [vmem:[%s498 + $0x74] sm:$0xff]
      %v619 = vlaneseq
      %v620 = vshrl.u32 %v619, 7
      %v621 = vsub.s32 4, %v620
      %v622 = vrot.slane %v289, %v621
      %v623 = vmul.f32 %v611, %v622
      %v624 = vmul.f32 %v612, %v622
      %v625 = vmul.f32 %v613, %v622
      %v626 = vmul.f32 %v614, %v622
      %v627 = vmul.f32 %v615, %v622
      %v628 = vmul.f32 %v616, %v622
      %v629 = vmul.f32 %v617, %v622
      %v630 = vmul.f32 %v618, %v622
      %v631 = vadd.f32 %v603, %v623
      %v632 = vadd.f32 %v604, %v624
      %v633 = vadd.f32 %v605, %v625
      %v634 = vadd.f32 %v606, %v626
      %v635 = vadd.f32 %v607, %v627
      %v636 = vadd.f32 %v608, %v628
      %v637 = vadd.f32 %v609, %v629
      %v638 = vadd.f32 %v610, %v630
      %v639 = vld [vmem:[%s498 + $0x5] sm:$0xff]
      %v640 = vld [vmem:[%s498 + $0x15] sm:$0xff]
      %v641 = vld [vmem:[%s498 + $0x25] sm:$0xff]
      %v642 = vld [vmem:[%s498 + $0x35] sm:$0xff]
      %v643 = vld [vmem:[%s498 + $0x45] sm:$0xff]
      %v644 = vld [vmem:[%s498 + $0x55] sm:$0xff]
      %v645 = vld [vmem:[%s498 + $0x65] sm:$0xff]
      %v646 = vld [vmem:[%s498 + $0x75] sm:$0xff]
      %v647 = vlaneseq
      %v648 = vshrl.u32 %v647, 7
      %v649 = vsub.s32 5, %v648
      %v650 = vrot.slane %v289, %v649
      %v651 = vmul.f32 %v639, %v650
      %v652 = vmul.f32 %v640, %v650
      %v653 = vmul.f32 %v641, %v650
      %v654 = vmul.f32 %v642, %v650
      %v655 = vmul.f32 %v643, %v650
      %v656 = vmul.f32 %v644, %v650
      %v657 = vmul.f32 %v645, %v650
      %v658 = vmul.f32 %v646, %v650
      %v659 = vadd.f32 %v631, %v651
      %v660 = vadd.f32 %v632, %v652
      %v661 = vadd.f32 %v633, %v653
      %v662 = vadd.f32 %v634, %v654
      %v663 = vadd.f32 %v635, %v655
      %v664 = vadd.f32 %v636, %v656
      %v665 = vadd.f32 %v637, %v657
      %v666 = vadd.f32 %v638, %v658
      %v667 = vld [vmem:[%s498 + $0x6] sm:$0xff]
      %v668 = vld [vmem:[%s498 + $0x16] sm:$0xff]
      %v669 = vld [vmem:[%s498 + $0x26] sm:$0xff]
      %v670 = vld [vmem:[%s498 + $0x36] sm:$0xff]
      %v671 = vld [vmem:[%s498 + $0x46] sm:$0xff]
      %v672 = vld [vmem:[%s498 + $0x56] sm:$0xff]
      %v673 = vld [vmem:[%s498 + $0x66] sm:$0xff]
      %v674 = vld [vmem:[%s498 + $0x76] sm:$0xff]
      %v675 = vlaneseq
      %v676 = vshrl.u32 %v675, 7
      %v677 = vsub.s32 6, %v676
      %v678 = vrot.slane %v289, %v677
      %v679 = vmul.f32 %v667, %v678
      %v680 = vmul.f32 %v668, %v678
      %v681 = vmul.f32 %v669, %v678
      %v682 = vmul.f32 %v670, %v678
      %v683 = vmul.f32 %v671, %v678
      %v684 = vmul.f32 %v672, %v678
      %v685 = vmul.f32 %v673, %v678
      %v686 = vmul.f32 %v674, %v678
      %v687 = vadd.f32 %v659, %v679
      %v688 = vadd.f32 %v660, %v680
      %v689 = vadd.f32 %v661, %v681
      %v690 = vadd.f32 %v662, %v682
      %v691 = vadd.f32 %v663, %v683
      %v692 = vadd.f32 %v664, %v684
      %v693 = vadd.f32 %v665, %v685
      %v694 = vadd.f32 %v666, %v686
      %s695 = scalar_lea.vmem [#allocation2], 32
      %v696 = vld [vmem:[%s695] sm:$0xff]
      %v697 = vld [vmem:[%s695 + $0x10] sm:$0xff]
      %v698 = vld [vmem:[%s695 + $0x20] sm:$0xff]
      %v699 = vld [vmem:[%s695 + $0x30] sm:$0xff]
      %v700 = vld [vmem:[%s695 + $0x40] sm:$0xff]
      %v701 = vld [vmem:[%s695 + $0x50] sm:$0xff]
      %v702 = vld [vmem:[%s695 + $0x60] sm:$0xff]
      %v703 = vld [vmem:[%s695 + $0x70] sm:$0xff]
      %v704 = vlaneseq
      %v705 = vshrl.u32 %v704, 7
      %v706 = vsub.s32 0, %v705
      %v707 = vrot.slane %v290, %v706
      %v708 = vmul.f32 %v696, %v707
      %v709 = vmul.f32 %v697, %v707
      %v710 = vmul.f32 %v698, %v707
      %v711 = vmul.f32 %v699, %v707
      %v712 = vmul.f32 %v700, %v707
      %v713 = vmul.f32 %v701, %v707
      %v714 = vmul.f32 %v702, %v707
      %v715 = vmul.f32 %v703, %v707
      %v716 = vadd.f32 %v687, %v708
      %v717 = vadd.f32 %v688, %v709
      %v718 = vadd.f32 %v689, %v710
      %v719 = vadd.f32 %v690, %v711
      %v720 = vadd.f32 %v691, %v712
      %v721 = vadd.f32 %v692, %v713
      %v722 = vadd.f32 %v693, %v714
      %v723 = vadd.f32 %v694, %v715
      %v724 = vld [vmem:[%s695 + $0x1] sm:$0xff]
      %v725 = vld [vmem:[%s695 + $0x11] sm:$0xff]
      %v726 = vld [vmem:[%s695 + $0x21] sm:$0xff]
      %v727 = vld [vmem:[%s695 + $0x31] sm:$0xff]
      %v728 = vld [vmem:[%s695 + $0x41] sm:$0xff]
      %v729 = vld [vmem:[%s695 + $0x51] sm:$0xff]
      %v730 = vld [vmem:[%s695 + $0x61] sm:$0xff]
      %v731 = vld [vmem:[%s695 + $0x71] sm:$0xff]
      %v732 = vlaneseq
      %v733 = vshrl.u32 %v732, 7
      %v734 = vsub.s32 1, %v733
      %v735 = vrot.slane %v290, %v734
      %v736 = vmul.f32 %v724, %v735
      %v737 = vmul.f32 %v725, %v735
      %v738 = vmul.f32 %v726, %v735
      %v739 = vmul.f32 %v727, %v735
      %v740 = vmul.f32 %v728, %v735
      %v741 = vmul.f32 %v729, %v735
      %v742 = vmul.f32 %v730, %v735
      %v743 = vmul.f32 %v731, %v735
      %v744 = vadd.f32 %v716, %v736
      %v745 = vadd.f32 %v717, %v737
      %v746 = vadd.f32 %v718, %v738
      %v747 = vadd.f32 %v719, %v739
      %v748 = vadd.f32 %v720, %v740
      %v749 = vadd.f32 %v721, %v741
      %v750 = vadd.f32 %v722, %v742
      %v751 = vadd.f32 %v723, %v743
      %v752 = vld [vmem:[%s695 + $0x2] sm:$0xff]
      %v753 = vld [vmem:[%s695 + $0x12] sm:$0xff]
      %v754 = vld [vmem:[%s695 + $0x22] sm:$0xff]
      %v755 = vld [vmem:[%s695 + $0x32] sm:$0xff]
      %v756 = vld [vmem:[%s695 + $0x42] sm:$0xff]
      %v757 = vld [vmem:[%s695 + $0x52] sm:$0xff]
      %v758 = vld [vmem:[%s695 + $0x62] sm:$0xff]
      %v759 = vld [vmem:[%s695 + $0x72] sm:$0xff]
      %v760 = vlaneseq
      %v761 = vshrl.u32 %v760, 7
      %v762 = vsub.s32 2, %v761
      %v763 = vrot.slane %v290, %v762
      %v764 = vmul.f32 %v752, %v763
      %v765 = vmul.f32 %v753, %v763
      %v766 = vmul.f32 %v754, %v763
      %v767 = vmul.f32 %v755, %v763
      %v768 = vmul.f32 %v756, %v763
      %v769 = vmul.f32 %v757, %v763
      %v770 = vmul.f32 %v758, %v763
      %v771 = vmul.f32 %v759, %v763
      %v772 = vadd.f32 %v744, %v764
      %v773 = vadd.f32 %v745, %v765
      %v774 = vadd.f32 %v746, %v766
      %v775 = vadd.f32 %v747, %v767
      %v776 = vadd.f32 %v748, %v768
      %v777 = vadd.f32 %v749, %v769
      %v778 = vadd.f32 %v750, %v770
      %v779 = vadd.f32 %v751, %v771
      %v780 = vld [vmem:[%s695 + $0x3] sm:$0xff]
      %v781 = vld [vmem:[%s695 + $0x13] sm:$0xff]
      %v782 = vld [vmem:[%s695 + $0x23] sm:$0xff]
      %v783 = vld [vmem:[%s695 + $0x33] sm:$0xff]
      %v784 = vld [vmem:[%s695 + $0x43] sm:$0xff]
      %v785 = vld [vmem:[%s695 + $0x53] sm:$0xff]
      %v786 = vld [vmem:[%s695 + $0x63] sm:$0xff]
      %v787 = vld [vmem:[%s695 + $0x73] sm:$0xff]
      %v788 = vlaneseq
      %v789 = vshrl.u32 %v788, 7
      %v790 = vsub.s32 3, %v789
      %v791 = vrot.slane %v290, %v790
      %v792 = vmul.f32 %v780, %v791
      %v793 = vmul.f32 %v781, %v791
      %v794 = vmul.f32 %v782, %v791
      %v795 = vmul.f32 %v783, %v791
      %v796 = vmul.f32 %v784, %v791
      %v797 = vmul.f32 %v785, %v791
      %v798 = vmul.f32 %v786, %v791
      %v799 = vmul.f32 %v787, %v791
      %v800 = vadd.f32 %v772, %v792
      %v801 = vadd.f32 %v773, %v793
      %v802 = vadd.f32 %v774, %v794
      %v803 = vadd.f32 %v775, %v795
      %v804 = vadd.f32 %v776, %v796
      %v805 = vadd.f32 %v777, %v797
      %v806 = vadd.f32 %v778, %v798
      %v807 = vadd.f32 %v779, %v799
      %v808 = vld [vmem:[%s695 + $0x4] sm:$0xff]
      %v809 = vld [vmem:[%s695 + $0x14] sm:$0xff]
      %v810 = vld [vmem:[%s695 + $0x24] sm:$0xff]
      %v811 = vld [vmem:[%s695 + $0x34] sm:$0xff]
      %v812 = vld [vmem:[%s695 + $0x44] sm:$0xff]
      %v813 = vld [vmem:[%s695 + $0x54] sm:$0xff]
      %v814 = vld [vmem:[%s695 + $0x64] sm:$0xff]
      %v815 = vld [vmem:[%s695 + $0x74] sm:$0xff]
      %v816 = vlaneseq
      %v817 = vshrl.u32 %v816, 7
      %v818 = vsub.s32 4, %v817
      %v819 = vrot.slane %v290, %v818
      %v820 = vmul.f32 %v808, %v819
      %v821 = vmul.f32 %v809, %v819
      %v822 = vmul.f32 %v810, %v819
      %v823 = vmul.f32 %v811, %v819
      %v824 = vmul.f32 %v812, %v819
      %v825 = vmul.f32 %v813, %v819
      %v826 = vmul.f32 %v814, %v819
      %v827 = vmul.f32 %v815, %v819
      %v828 = vadd.f32 %v800, %v820
      %v829 = vadd.f32 %v801, %v821
      %v830 = vadd.f32 %v802, %v822
      %v831 = vadd.f32 %v803, %v823
      %v832 = vadd.f32 %v804, %v824
      %v833 = vadd.f32 %v805, %v825
      %v834 = vadd.f32 %v806, %v826
      %v835 = vadd.f32 %v807, %v827
      %v836 = vld [vmem:[%s695 + $0x5] sm:$0xff]
      %v837 = vld [vmem:[%s695 + $0x15] sm:$0xff]
      %v838 = vld [vmem:[%s695 + $0x25] sm:$0xff]
      %v839 = vld [vmem:[%s695 + $0x35] sm:$0xff]
      %v840 = vld [vmem:[%s695 + $0x45] sm:$0xff]
      %v841 = vld [vmem:[%s695 + $0x55] sm:$0xff]
      %v842 = vld [vmem:[%s695 + $0x65] sm:$0xff]
      %v843 = vld [vmem:[%s695 + $0x75] sm:$0xff]
      %v844 = vlaneseq
      %v845 = vshrl.u32 %v844, 7
      %v846 = vsub.s32 5, %v845
      %v847 = vrot.slane %v290, %v846
      %v848 = vmul.f32 %v836, %v847
      %v849 = vmul.f32 %v837, %v847
      %v850 = vmul.f32 %v838, %v847
      %v851 = vmul.f32 %v839, %v847
      %v852 = vmul.f32 %v840, %v847
      %v853 = vmul.f32 %v841, %v847
      %v854 = vmul.f32 %v842, %v847
      %v855 = vmul.f32 %v843, %v847
      %v856 = vadd.f32 %v828, %v848
      %v857 = vadd.f32 %v829, %v849
      %v858 = vadd.f32 %v830, %v850
      %v859 = vadd.f32 %v831, %v851
      %v860 = vadd.f32 %v832, %v852
      %v861 = vadd.f32 %v833, %v853
      %v862 = vadd.f32 %v834, %v854
      %v863 = vadd.f32 %v835, %v855
      %v864 = vld [vmem:[%s695 + $0x6] sm:$0xff]
      %v865 = vld [vmem:[%s695 + $0x16] sm:$0xff]
      %v866 = vld [vmem:[%s695 + $0x26] sm:$0xff]
      %v867 = vld [vmem:[%s695 + $0x36] sm:$0xff]
      %v868 = vld [vmem:[%s695 + $0x46] sm:$0xff]
      %v869 = vld [vmem:[%s695 + $0x56] sm:$0xff]
      %v870 = vld [vmem:[%s695 + $0x66] sm:$0xff]
      %v871 = vld [vmem:[%s695 + $0x76] sm:$0xff]
      %v872 = vlaneseq
      %v873 = vshrl.u32 %v872, 7
      %v874 = vsub.s32 6, %v873
      %v875 = vrot.slane %v290, %v874
      %v876 = vmul.f32 %v864, %v875
      %v877 = vmul.f32 %v865, %v875
      %v878 = vmul.f32 %v866, %v875
      %v879 = vmul.f32 %v867, %v875
      %v880 = vmul.f32 %v868, %v875
      %v881 = vmul.f32 %v869, %v875
      %v882 = vmul.f32 %v870, %v875
      %v883 = vmul.f32 %v871, %v875
      %v884 = vadd.f32 %v856, %v876
      %v885 = vadd.f32 %v857, %v877
      %v886 = vadd.f32 %v858, %v878
      %v887 = vadd.f32 %v859, %v879
      %v888 = vadd.f32 %v860, %v880
      %v889 = vadd.f32 %v861, %v881
      %v890 = vadd.f32 %v862, %v882
      %v891 = vadd.f32 %v863, %v883
      %v892 = vld [vmem:[%s248] sm:$0xff]
      %v893 = vld [vmem:[%s248 + $0x10] sm:$0xff]
      %v894 = vld [vmem:[%s248 + $0x20] sm:$0xff]
      %v895 = vld [vmem:[%s248 + $0x30] sm:$0xff]
      %v896 = vld [vmem:[%s248 + $0x40] sm:$0xff]
      %v897 = vld [vmem:[%s248 + $0x50] sm:$0xff]
      %v898 = vld [vmem:[%s248 + $0x60] sm:$0xff]
      %v899 = vld [vmem:[%s248 + $0x70] sm:$0xff]
      %v900 = vlaneseq
      %v901 = vshrl.u32 %v900, 7
      %v902 = vsub.s32 0, %v901
      %v903 = vrot.slane %v291, %v902
      %v904 = vmul.f32 %v892, %v903
      %v905 = vmul.f32 %v893, %v903
      %v906 = vmul.f32 %v894, %v903
      %v907 = vmul.f32 %v895, %v903
      %v908 = vmul.f32 %v896, %v903
      %v909 = vmul.f32 %v897, %v903
      %v910 = vmul.f32 %v898, %v903
      %v911 = vmul.f32 %v899, %v903
      %v912 = vadd.f32 %v884, %v904
      %v913 = vadd.f32 %v885, %v905
      %v914 = vadd.f32 %v886, %v906
      %v915 = vadd.f32 %v887, %v907
      %v916 = vadd.f32 %v888, %v908
      %v917 = vadd.f32 %v889, %v909
      %v918 = vadd.f32 %v890, %v910
      %v919 = vadd.f32 %v891, %v911
      %v920 = vld [vmem:[%s248 + $0x1] sm:$0xff]
      %v921 = vld [vmem:[%s248 + $0x11] sm:$0xff]
      %v922 = vld [vmem:[%s248 + $0x21] sm:$0xff]
      %v923 = vld [vmem:[%s248 + $0x31] sm:$0xff]
      %v924 = vld [vmem:[%s248 + $0x41] sm:$0xff]
      %v925 = vld [vmem:[%s248 + $0x51] sm:$0xff]
      %v926 = vld [vmem:[%s248 + $0x61] sm:$0xff]
      %v927 = vld [vmem:[%s248 + $0x71] sm:$0xff]
      %v928 = vlaneseq
      %v929 = vshrl.u32 %v928, 7
      %v930 = vsub.s32 1, %v929
      %v931 = vrot.slane %v291, %v930
      %v932 = vmul.f32 %v920, %v931
      %v933 = vmul.f32 %v921, %v931
      %v934 = vmul.f32 %v922, %v931
      %v935 = vmul.f32 %v923, %v931
      %v936 = vmul.f32 %v924, %v931
      %v937 = vmul.f32 %v925, %v931
      %v938 = vmul.f32 %v926, %v931
      %v939 = vmul.f32 %v927, %v931
      %v940 = vadd.f32 %v912, %v932
      %v941 = vadd.f32 %v913, %v933
      %v942 = vadd.f32 %v914, %v934
      %v943 = vadd.f32 %v915, %v935
      %v944 = vadd.f32 %v916, %v936
      %v945 = vadd.f32 %v917, %v937
      %v946 = vadd.f32 %v918, %v938
      %v947 = vadd.f32 %v919, %v939
      %v948 = vld [vmem:[%s248 + $0x2] sm:$0xff]
      %v949 = vld [vmem:[%s248 + $0x12] sm:$0xff]
      %v950 = vld [vmem:[%s248 + $0x22] sm:$0xff]
      %v951 = vld [vmem:[%s248 + $0x32] sm:$0xff]
      %v952 = vld [vmem:[%s248 + $0x42] sm:$0xff]
      %v953 = vld [vmem:[%s248 + $0x52] sm:$0xff]
      %v954 = vld [vmem:[%s248 + $0x62] sm:$0xff]
      %v955 = vld [vmem:[%s248 + $0x72] sm:$0xff]
      %v956 = vlaneseq
      %v957 = vshrl.u32 %v956, 7
      %v958 = vsub.s32 2, %v957
      %v959 = vrot.slane %v291, %v958
      %v960 = vmul.f32 %v948, %v959
      %v961 = vmul.f32 %v949, %v959
      %v962 = vmul.f32 %v950, %v959
      %v963 = vmul.f32 %v951, %v959
      %v964 = vmul.f32 %v952, %v959
      %v965 = vmul.f32 %v953, %v959
      %v966 = vmul.f32 %v954, %v959
      %v967 = vmul.f32 %v955, %v959
      %v968 = vadd.f32 %v940, %v960
      %v969 = vadd.f32 %v941, %v961
      %v970 = vadd.f32 %v942, %v962
      %v971 = vadd.f32 %v943, %v963
      %v972 = vadd.f32 %v944, %v964
      %v973 = vadd.f32 %v945, %v965
      %v974 = vadd.f32 %v946, %v966
      %v975 = vadd.f32 %v947, %v967
      %v976 = vld [vmem:[%s248 + $0x3] sm:$0xff]
      %v977 = vld [vmem:[%s248 + $0x13] sm:$0xff]
      %v978 = vld [vmem:[%s248 + $0x23] sm:$0xff]
      %v979 = vld [vmem:[%s248 + $0x33] sm:$0xff]
      %v980 = vld [vmem:[%s248 + $0x43] sm:$0xff]
      %v981 = vld [vmem:[%s248 + $0x53] sm:$0xff]
      %v982 = vld [vmem:[%s248 + $0x63] sm:$0xff]
      %v983 = vld [vmem:[%s248 + $0x73] sm:$0xff]
      %v984 = vlaneseq
      %v985 = vshrl.u32 %v984, 7
      %v986 = vsub.s32 3, %v985
      %v987 = vrot.slane %v291, %v986
      %v988 = vmul.f32 %v976, %v987
      %v989 = vmul.f32 %v977, %v987
      %v990 = vmul.f32 %v978, %v987
      %v991 = vmul.f32 %v979, %v987
      %v992 = vmul.f32 %v980, %v987
      %v993 = vmul.f32 %v981, %v987
      %v994 = vmul.f32 %v982, %v987
      %v995 = vmul.f32 %v983, %v987
      %v996 = vadd.f32 %v968, %v988
      %v997 = vadd.f32 %v969, %v989
      %v998 = vadd.f32 %v970, %v990
      %v999 = vadd.f32 %v971, %v991
      %v1000 = vadd.f32 %v972, %v992
      %v1001 = vadd.f32 %v973, %v993
      %v1002 = vadd.f32 %v974, %v994
      %v1003 = vadd.f32 %v975, %v995
      %v1004 = vld [vmem:[%s248 + $0x4] sm:$0xff]
      %v1005 = vld [vmem:[%s248 + $0x14] sm:$0xff]
      %v1006 = vld [vmem:[%s248 + $0x24] sm:$0xff]
      %v1007 = vld [vmem:[%s248 + $0x34] sm:$0xff]
      %v1008 = vld [vmem:[%s248 + $0x44] sm:$0xff]
      %v1009 = vld [vmem:[%s248 + $0x54] sm:$0xff]
      %v1010 = vld [vmem:[%s248 + $0x64] sm:$0xff]
      %v1011 = vld [vmem:[%s248 + $0x74] sm:$0xff]
      %v1012 = vlaneseq
      %v1013 = vshrl.u32 %v1012, 7
      %v1014 = vsub.s32 4, %v1013
      %v1015 = vrot.slane %v291, %v1014
      %v1016 = vmul.f32 %v1004, %v1015
      %v1017 = vmul.f32 %v1005, %v1015
      %v1018 = vmul.f32 %v1006, %v1015
      %v1019 = vmul.f32 %v1007, %v1015
      %v1020 = vmul.f32 %v1008, %v1015
      %v1021 = vmul.f32 %v1009, %v1015
      %v1022 = vmul.f32 %v1010, %v1015
      %v1023 = vmul.f32 %v1011, %v1015
      %v1024 = vadd.f32 %v996, %v1016
      %v1025 = vadd.f32 %v997, %v1017
      %v1026 = vadd.f32 %v998, %v1018
      %v1027 = vadd.f32 %v999, %v1019
      %v1028 = vadd.f32 %v1000, %v1020
      %v1029 = vadd.f32 %v1001, %v1021
      %v1030 = vadd.f32 %v1002, %v1022
      %v1031 = vadd.f32 %v1003, %v1023
      %v1032 = vld [vmem:[%s248 + $0x5] sm:$0xff]
      %v1033 = vld [vmem:[%s248 + $0x15] sm:$0xff]
      %v1034 = vld [vmem:[%s248 + $0x25] sm:$0xff]
      %v1035 = vld [vmem:[%s248 + $0x35] sm:$0xff]
      %v1036 = vld [vmem:[%s248 + $0x45] sm:$0xff]
      %v1037 = vld [vmem:[%s248 + $0x55] sm:$0xff]
      %v1038 = vld [vmem:[%s248 + $0x65] sm:$0xff]
      %v1039 = vld [vmem:[%s248 + $0x75] sm:$0xff]
      %v1040 = vlaneseq
      %v1041 = vshrl.u32 %v1040, 7
      %v1042 = vsub.s32 5, %v1041
      %v1043 = vrot.slane %v291, %v1042
      %v1044 = vmul.f32 %v1032, %v1043
      %v1045 = vmul.f32 %v1033, %v1043
      %v1046 = vmul.f32 %v1034, %v1043
      %v1047 = vmul.f32 %v1035, %v1043
      %v1048 = vmul.f32 %v1036, %v1043
      %v1049 = vmul.f32 %v1037, %v1043
      %v1050 = vmul.f32 %v1038, %v1043
      %v1051 = vmul.f32 %v1039, %v1043
      %v1052 = vadd.f32 %v1024, %v1044
      %v1053 = vadd.f32 %v1025, %v1045
      %v1054 = vadd.f32 %v1026, %v1046
      %v1055 = vadd.f32 %v1027, %v1047
      %v1056 = vadd.f32 %v1028, %v1048
      %v1057 = vadd.f32 %v1029, %v1049
      %v1058 = vadd.f32 %v1030, %v1050
      %v1059 = vadd.f32 %v1031, %v1051
      %v1060 = vld [vmem:[%s248 + $0x6] sm:$0xff]
      %v1061 = vld [vmem:[%s248 + $0x16] sm:$0xff]
      %v1062 = vld [vmem:[%s248 + $0x26] sm:$0xff]
      %v1063 = vld [vmem:[%s248 + $0x36] sm:$0xff]
      %v1064 = vld [vmem:[%s248 + $0x46] sm:$0xff]
      %v1065 = vld [vmem:[%s248 + $0x56] sm:$0xff]
      %v1066 = vld [vmem:[%s248 + $0x66] sm:$0xff]
      %v1067 = vld [vmem:[%s248 + $0x76] sm:$0xff]
      %v1068 = vlaneseq
      %v1069 = vshrl.u32 %v1068, 7
      %v1070 = vsub.s32 6, %v1069
      %v1071 = vrot.slane %v291, %v1070
      %v1072 = vmul.f32 %v1060, %v1071
      %v1073 = vmul.f32 %v1061, %v1071
      %v1074 = vmul.f32 %v1062, %v1071
      %v1075 = vmul.f32 %v1063, %v1071
      %v1076 = vmul.f32 %v1064, %v1071
      %v1077 = vmul.f32 %v1065, %v1071
      %v1078 = vmul.f32 %v1066, %v1071
      %v1079 = vmul.f32 %v1067, %v1071
      %v1080 = vadd.f32 %v1052, %v1072
      %v1081 = vadd.f32 %v1053, %v1073
      %v1082 = vadd.f32 %v1054, %v1074
      %v1083 = vadd.f32 %v1055, %v1075
      %v1084 = vadd.f32 %v1056, %v1076
      %v1085 = vadd.f32 %v1057, %v1077
      %v1086 = vadd.f32 %v1058, %v1078
      %v1087 = vadd.f32 %v1059, %v1079
      %v1088 = vld [vmem:[%s268] sm:$0xff]
      %v1089 = vld [vmem:[%s268 + $0x10] sm:$0xff]
      %v1090 = vld [vmem:[%s268 + $0x20] sm:$0xff]
      %v1091 = vld [vmem:[%s268 + $0x30] sm:$0xff]
      %v1092 = vld [vmem:[%s268 + $0x40] sm:$0xff]
      %v1093 = vld [vmem:[%s268 + $0x50] sm:$0xff]
      %v1094 = vld [vmem:[%s268 + $0x60] sm:$0xff]
      %v1095 = vld [vmem:[%s268 + $0x70] sm:$0xff]
      %v1096 = vlaneseq
      %v1097 = vshrl.u32 %v1096, 7
      %v1098 = vsub.s32 0, %v1097
      %v1099 = vrot.slane %v292, %v1098
      %v1100 = vmul.f32 %v1088, %v1099
      %v1101 = vmul.f32 %v1089, %v1099
      %v1102 = vmul.f32 %v1090, %v1099
      %v1103 = vmul.f32 %v1091, %v1099
      %v1104 = vmul.f32 %v1092, %v1099
      %v1105 = vmul.f32 %v1093, %v1099
      %v1106 = vmul.f32 %v1094, %v1099
      %v1107 = vmul.f32 %v1095, %v1099
      %v1108 = vadd.f32 %v1080, %v1100
      %v1109 = vadd.f32 %v1081, %v1101
      %v1110 = vadd.f32 %v1082, %v1102
      %v1111 = vadd.f32 %v1083, %v1103
      %v1112 = vadd.f32 %v1084, %v1104
      %v1113 = vadd.f32 %v1085, %v1105
      %v1114 = vadd.f32 %v1086, %v1106
      %v1115 = vadd.f32 %v1087, %v1107
      %v1116 = vld [vmem:[%s268 + $0x1] sm:$0xff]
      %v1117 = vld [vmem:[%s268 + $0x11] sm:$0xff]
      %v1118 = vld [vmem:[%s268 + $0x21] sm:$0xff]
      %v1119 = vld [vmem:[%s268 + $0x31] sm:$0xff]
      %v1120 = vld [vmem:[%s268 + $0x41] sm:$0xff]
      %v1121 = vld [vmem:[%s268 + $0x51] sm:$0xff]
      %v1122 = vld [vmem:[%s268 + $0x61] sm:$0xff]
      %v1123 = vld [vmem:[%s268 + $0x71] sm:$0xff]
      %v1124 = vlaneseq
      %v1125 = vshrl.u32 %v1124, 7
      %v1126 = vsub.s32 1, %v1125
      %v1127 = vrot.slane %v292, %v1126
      %v1128 = vmul.f32 %v1116, %v1127
      %v1129 = vmul.f32 %v1117, %v1127
      %v1130 = vmul.f32 %v1118, %v1127
      %v1131 = vmul.f32 %v1119, %v1127
      %v1132 = vmul.f32 %v1120, %v1127
      %v1133 = vmul.f32 %v1121, %v1127
      %v1134 = vmul.f32 %v1122, %v1127
      %v1135 = vmul.f32 %v1123, %v1127
      %v1136 = vadd.f32 %v1108, %v1128
      %v1137 = vadd.f32 %v1109, %v1129
      %v1138 = vadd.f32 %v1110, %v1130
      %v1139 = vadd.f32 %v1111, %v1131
      %v1140 = vadd.f32 %v1112, %v1132
      %v1141 = vadd.f32 %v1113, %v1133
      %v1142 = vadd.f32 %v1114, %v1134
      %v1143 = vadd.f32 %v1115, %v1135
      %v1144 = vld [vmem:[%s268 + $0x2] sm:$0xff]
      %v1145 = vld [vmem:[%s268 + $0x12] sm:$0xff]
      %v1146 = vld [vmem:[%s268 + $0x22] sm:$0xff]
      %v1147 = vld [vmem:[%s268 + $0x32] sm:$0xff]
      %v1148 = vld [vmem:[%s268 + $0x42] sm:$0xff]
      %v1149 = vld [vmem:[%s268 + $0x52] sm:$0xff]
      %v1150 = vld [vmem:[%s268 + $0x62] sm:$0xff]
      %v1151 = vld [vmem:[%s268 + $0x72] sm:$0xff]
      %v1152 = vlaneseq
      %v1153 = vshrl.u32 %v1152, 7
      %v1154 = vsub.s32 2, %v1153
      %v1155 = vrot.slane %v292, %v1154
      %v1156 = vmul.f32 %v1144, %v1155
      %v1157 = vmul.f32 %v1145, %v1155
      %v1158 = vmul.f32 %v1146, %v1155
      %v1159 = vmul.f32 %v1147, %v1155
      %v1160 = vmul.f32 %v1148, %v1155
      %v1161 = vmul.f32 %v1149, %v1155
      %v1162 = vmul.f32 %v1150, %v1155
      %v1163 = vmul.f32 %v1151, %v1155
      %v1164 = vadd.f32 %v1136, %v1156
      %v1165 = vadd.f32 %v1137, %v1157
      %v1166 = vadd.f32 %v1138, %v1158
      %v1167 = vadd.f32 %v1139, %v1159
      %v1168 = vadd.f32 %v1140, %v1160
      %v1169 = vadd.f32 %v1141, %v1161
      %v1170 = vadd.f32 %v1142, %v1162
      %v1171 = vadd.f32 %v1143, %v1163
      %v1172 = vld [vmem:[%s268 + $0x3] sm:$0xff]
      %v1173 = vld [vmem:[%s268 + $0x13] sm:$0xff]
      %v1174 = vld [vmem:[%s268 + $0x23] sm:$0xff]
      %v1175 = vld [vmem:[%s268 + $0x33] sm:$0xff]
      %v1176 = vld [vmem:[%s268 + $0x43] sm:$0xff]
      %v1177 = vld [vmem:[%s268 + $0x53] sm:$0xff]
      %v1178 = vld [vmem:[%s268 + $0x63] sm:$0xff]
      %v1179 = vld [vmem:[%s268 + $0x73] sm:$0xff]
      %v1180 = vlaneseq
      %v1181 = vshrl.u32 %v1180, 7
      %v1182 = vsub.s32 3, %v1181
      %v1183 = vrot.slane %v292, %v1182
      %v1184 = vmul.f32 %v1172, %v1183
      %v1185 = vmul.f32 %v1173, %v1183
      %v1186 = vmul.f32 %v1174, %v1183
      %v1187 = vmul.f32 %v1175, %v1183
      %v1188 = vmul.f32 %v1176, %v1183
      %v1189 = vmul.f32 %v1177, %v1183
      %v1190 = vmul.f32 %v1178, %v1183
      %v1191 = vmul.f32 %v1179, %v1183
      %v1192 = vadd.f32 %v1164, %v1184
      %v1193 = vadd.f32 %v1165, %v1185
      %v1194 = vadd.f32 %v1166, %v1186
      %v1195 = vadd.f32 %v1167, %v1187
      %v1196 = vadd.f32 %v1168, %v1188
      %v1197 = vadd.f32 %v1169, %v1189
      %v1198 = vadd.f32 %v1170, %v1190
      %v1199 = vadd.f32 %v1171, %v1191
      %v1200 = vld [vmem:[%s268 + $0x4] sm:$0xff]
      %v1201 = vld [vmem:[%s268 + $0x14] sm:$0xff]
      %v1202 = vld [vmem:[%s268 + $0x24] sm:$0xff]
      %v1203 = vld [vmem:[%s268 + $0x34] sm:$0xff]
      %v1204 = vld [vmem:[%s268 + $0x44] sm:$0xff]
      %v1205 = vld [vmem:[%s268 + $0x54] sm:$0xff]
      %v1206 = vld [vmem:[%s268 + $0x64] sm:$0xff]
      %v1207 = vld [vmem:[%s268 + $0x74] sm:$0xff]
      %v1208 = vlaneseq
      %v1209 = vshrl.u32 %v1208, 7
      %v1210 = vsub.s32 4, %v1209
      %v1211 = vrot.slane %v292, %v1210
      %v1212 = vmul.f32 %v1200, %v1211
      %v1213 = vmul.f32 %v1201, %v1211
      %v1214 = vmul.f32 %v1202, %v1211
      %v1215 = vmul.f32 %v1203, %v1211
      %v1216 = vmul.f32 %v1204, %v1211
      %v1217 = vmul.f32 %v1205, %v1211
      %v1218 = vmul.f32 %v1206, %v1211
      %v1219 = vmul.f32 %v1207, %v1211
      %v1220 = vadd.f32 %v1192, %v1212
      %v1221 = vadd.f32 %v1193, %v1213
      %v1222 = vadd.f32 %v1194, %v1214
      %v1223 = vadd.f32 %v1195, %v1215
      %v1224 = vadd.f32 %v1196, %v1216
      %v1225 = vadd.f32 %v1197, %v1217
      %v1226 = vadd.f32 %v1198, %v1218
      %v1227 = vadd.f32 %v1199, %v1219
      %v1228 = vld [vmem:[%s268 + $0x5] sm:$0xff]
      %v1229 = vld [vmem:[%s268 + $0x15] sm:$0xff]
      %v1230 = vld [vmem:[%s268 + $0x25] sm:$0xff]
      %v1231 = vld [vmem:[%s268 + $0x35] sm:$0xff]
      %v1232 = vld [vmem:[%s268 + $0x45] sm:$0xff]
      %v1233 = vld [vmem:[%s268 + $0x55] sm:$0xff]
      %v1234 = vld [vmem:[%s268 + $0x65] sm:$0xff]
      %v1235 = vld [vmem:[%s268 + $0x75] sm:$0xff]
      %v1236 = vlaneseq
      %v1237 = vshrl.u32 %v1236, 7
      %v1238 = vsub.s32 5, %v1237
      %v1239 = vrot.slane %v292, %v1238
      %v1240 = vmul.f32 %v1228, %v1239
      %v1241 = vmul.f32 %v1229, %v1239
      %v1242 = vmul.f32 %v1230, %v1239
      %v1243 = vmul.f32 %v1231, %v1239
      %v1244 = vmul.f32 %v1232, %v1239
      %v1245 = vmul.f32 %v1233, %v1239
      %v1246 = vmul.f32 %v1234, %v1239
      %v1247 = vmul.f32 %v1235, %v1239
      %v1248 = vadd.f32 %v1220, %v1240
      %v1249 = vadd.f32 %v1221, %v1241
      %v1250 = vadd.f32 %v1222, %v1242
      %v1251 = vadd.f32 %v1223, %v1243
      %v1252 = vadd.f32 %v1224, %v1244
      %v1253 = vadd.f32 %v1225, %v1245
      %v1254 = vadd.f32 %v1226, %v1246
      %v1255 = vadd.f32 %v1227, %v1247
      %v1256 = vld [vmem:[%s268 + $0x6] sm:$0xff]
      %v1257 = vld [vmem:[%s268 + $0x16] sm:$0xff]
      %v1258 = vld [vmem:[%s268 + $0x26] sm:$0xff]
      %v1259 = vld [vmem:[%s268 + $0x36] sm:$0xff]
      %v1260 = vld [vmem:[%s268 + $0x46] sm:$0xff]
      %v1261 = vld [vmem:[%s268 + $0x56] sm:$0xff]
      %v1262 = vld [vmem:[%s268 + $0x66] sm:$0xff]
      %v1263 = vld [vmem:[%s268 + $0x76] sm:$0xff]
      %v1264 = vlaneseq
      %v1265 = vshrl.u32 %v1264, 7
      %v1266 = vsub.s32 6, %v1265
      %v1267 = vrot.slane %v292, %v1266
      %v1268 = vmul.f32 %v1256, %v1267
      %v1269 = vmul.f32 %v1257, %v1267
      %v1270 = vmul.f32 %v1258, %v1267
      %v1271 = vmul.f32 %v1259, %v1267
      %v1272 = vmul.f32 %v1260, %v1267
      %v1273 = vmul.f32 %v1261, %v1267
      %v1274 = vmul.f32 %v1262, %v1267
      %v1275 = vmul.f32 %v1263, %v1267
      %v1276 = vadd.f32 %v1248, %v1268
      %v1277 = vadd.f32 %v1249, %v1269
      %v1278 = vadd.f32 %v1250, %v1270
      %v1279 = vadd.f32 %v1251, %v1271
      %v1280 = vadd.f32 %v1252, %v1272
      %v1281 = vadd.f32 %v1253, %v1273
      %v1282 = vadd.f32 %v1254, %v1274
      %v1283 = vadd.f32 %v1255, %v1275
      %v1284 = vld [vmem:[%s271] sm:$0xff]
      %v1285 = vld [vmem:[%s271 + $0x10] sm:$0xff]
      %v1286 = vld [vmem:[%s271 + $0x20] sm:$0xff]
      %v1287 = vld [vmem:[%s271 + $0x30] sm:$0xff]
      %v1288 = vld [vmem:[%s271 + $0x40] sm:$0xff]
      %v1289 = vld [vmem:[%s271 + $0x50] sm:$0xff]
      %v1290 = vld [vmem:[%s271 + $0x60] sm:$0xff]
      %v1291 = vld [vmem:[%s271 + $0x70] sm:$0xff]
      %v1292 = vlaneseq
      %v1293 = vshrl.u32 %v1292, 7
      %v1294 = vsub.s32 0, %v1293
      %v1295 = vrot.slane %v293, %v1294
      %v1296 = vmul.f32 %v1284, %v1295
      %v1297 = vmul.f32 %v1285, %v1295
      %v1298 = vmul.f32 %v1286, %v1295
      %v1299 = vmul.f32 %v1287, %v1295
      %v1300 = vmul.f32 %v1288, %v1295
      %v1301 = vmul.f32 %v1289, %v1295
      %v1302 = vmul.f32 %v1290, %v1295
      %v1303 = vmul.f32 %v1291, %v1295
      %v1304 = vadd.f32 %v1276, %v1296
      %v1305 = vadd.f32 %v1277, %v1297
      %v1306 = vadd.f32 %v1278, %v1298
      %v1307 = vadd.f32 %v1279, %v1299
      %v1308 = vadd.f32 %v1280, %v1300
      %v1309 = vadd.f32 %v1281, %v1301
      %v1310 = vadd.f32 %v1282, %v1302
      %v1311 = vadd.f32 %v1283, %v1303
      %v1312 = vld [vmem:[%s271 + $0x1] sm:$0xff]
      %v1313 = vld [vmem:[%s271 + $0x11] sm:$0xff]
      %v1314 = vld [vmem:[%s271 + $0x21] sm:$0xff]
      %v1315 = vld [vmem:[%s271 + $0x31] sm:$0xff]
      %v1316 = vld [vmem:[%s271 + $0x41] sm:$0xff]
      %v1317 = vld [vmem:[%s271 + $0x51] sm:$0xff]
      %v1318 = vld [vmem:[%s271 + $0x61] sm:$0xff]
      %v1319 = vld [vmem:[%s271 + $0x71] sm:$0xff]
      %v1320 = vlaneseq
      %v1321 = vshrl.u32 %v1320, 7
      %v1322 = vsub.s32 1, %v1321
      %v1323 = vrot.slane %v293, %v1322
      %v1324 = vmul.f32 %v1312, %v1323
      %v1325 = vmul.f32 %v1313, %v1323
      %v1326 = vmul.f32 %v1314, %v1323
      %v1327 = vmul.f32 %v1315, %v1323
      %v1328 = vmul.f32 %v1316, %v1323
      %v1329 = vmul.f32 %v1317, %v1323
      %v1330 = vmul.f32 %v1318, %v1323
      %v1331 = vmul.f32 %v1319, %v1323
      %v1332 = vadd.f32 %v1304, %v1324
      %v1333 = vadd.f32 %v1305, %v1325
      %v1334 = vadd.f32 %v1306, %v1326
      %v1335 = vadd.f32 %v1307, %v1327
      %v1336 = vadd.f32 %v1308, %v1328
      %v1337 = vadd.f32 %v1309, %v1329
      %v1338 = vadd.f32 %v1310, %v1330
      %v1339 = vadd.f32 %v1311, %v1331
      %v1340 = vld [vmem:[%s271 + $0x2] sm:$0xff]
      %v1341 = vld [vmem:[%s271 + $0x12] sm:$0xff]
      %v1342 = vld [vmem:[%s271 + $0x22] sm:$0xff]
      %v1343 = vld [vmem:[%s271 + $0x32] sm:$0xff]
      %v1344 = vld [vmem:[%s271 + $0x42] sm:$0xff]
      %v1345 = vld [vmem:[%s271 + $0x52] sm:$0xff]
      %v1346 = vld [vmem:[%s271 + $0x62] sm:$0xff]
      %v1347 = vld [vmem:[%s271 + $0x72] sm:$0xff]
      %v1348 = vlaneseq
      %v1349 = vshrl.u32 %v1348, 7
      %v1350 = vsub.s32 2, %v1349
      %v1351 = vrot.slane %v293, %v1350
      %v1352 = vmul.f32 %v1340, %v1351
      %v1353 = vmul.f32 %v1341, %v1351
      %v1354 = vmul.f32 %v1342, %v1351
      %v1355 = vmul.f32 %v1343, %v1351
      %v1356 = vmul.f32 %v1344, %v1351
      %v1357 = vmul.f32 %v1345, %v1351
      %v1358 = vmul.f32 %v1346, %v1351
      %v1359 = vmul.f32 %v1347, %v1351
      %v1360 = vadd.f32 %v1332, %v1352
      %v1361 = vadd.f32 %v1333, %v1353
      %v1362 = vadd.f32 %v1334, %v1354
      %v1363 = vadd.f32 %v1335, %v1355
      %v1364 = vadd.f32 %v1336, %v1356
      %v1365 = vadd.f32 %v1337, %v1357
      %v1366 = vadd.f32 %v1338, %v1358
      %v1367 = vadd.f32 %v1339, %v1359
      %v1368 = vld [vmem:[%s271 + $0x3] sm:$0xff]
      %v1369 = vld [vmem:[%s271 + $0x13] sm:$0xff]
      %v1370 = vld [vmem:[%s271 + $0x23] sm:$0xff]
      %v1371 = vld [vmem:[%s271 + $0x33] sm:$0xff]
      %v1372 = vld [vmem:[%s271 + $0x43] sm:$0xff]
      %v1373 = vld [vmem:[%s271 + $0x53] sm:$0xff]
      %v1374 = vld [vmem:[%s271 + $0x63] sm:$0xff]
      %v1375 = vld [vmem:[%s271 + $0x73] sm:$0xff]
      %v1376 = vlaneseq
      %v1377 = vshrl.u32 %v1376, 7
      %v1378 = vsub.s32 3, %v1377
      %v1379 = vrot.slane %v293, %v1378
      %v1380 = vmul.f32 %v1368, %v1379
      %v1381 = vmul.f32 %v1369, %v1379
      %v1382 = vmul.f32 %v1370, %v1379
      %v1383 = vmul.f32 %v1371, %v1379
      %v1384 = vmul.f32 %v1372, %v1379
      %v1385 = vmul.f32 %v1373, %v1379
      %v1386 = vmul.f32 %v1374, %v1379
      %v1387 = vmul.f32 %v1375, %v1379
      %v1388 = vadd.f32 %v1360, %v1380
      %v1389 = vadd.f32 %v1361, %v1381
      %v1390 = vadd.f32 %v1362, %v1382
      %v1391 = vadd.f32 %v1363, %v1383
      %v1392 = vadd.f32 %v1364, %v1384
      %v1393 = vadd.f32 %v1365, %v1385
      %v1394 = vadd.f32 %v1366, %v1386
      %v1395 = vadd.f32 %v1367, %v1387
      %v1396 = vld [vmem:[%s271 + $0x4] sm:$0xff]
      %v1397 = vld [vmem:[%s271 + $0x14] sm:$0xff]
      %v1398 = vld [vmem:[%s271 + $0x24] sm:$0xff]
      %v1399 = vld [vmem:[%s271 + $0x34] sm:$0xff]
      %v1400 = vld [vmem:[%s271 + $0x44] sm:$0xff]
      %v1401 = vld [vmem:[%s271 + $0x54] sm:$0xff]
      %v1402 = vld [vmem:[%s271 + $0x64] sm:$0xff]
      %v1403 = vld [vmem:[%s271 + $0x74] sm:$0xff]
      %v1404 = vlaneseq
      %v1405 = vshrl.u32 %v1404, 7
      %v1406 = vsub.s32 4, %v1405
      %v1407 = vrot.slane %v293, %v1406
      %v1408 = vmul.f32 %v1396, %v1407
      %v1409 = vmul.f32 %v1397, %v1407
      %v1410 = vmul.f32 %v1398, %v1407
      %v1411 = vmul.f32 %v1399, %v1407
      %v1412 = vmul.f32 %v1400, %v1407
      %v1413 = vmul.f32 %v1401, %v1407
      %v1414 = vmul.f32 %v1402, %v1407
      %v1415 = vmul.f32 %v1403, %v1407
      %v1416 = vadd.f32 %v1388, %v1408
      %v1417 = vadd.f32 %v1389, %v1409
      %v1418 = vadd.f32 %v1390, %v1410
      %v1419 = vadd.f32 %v1391, %v1411
      %v1420 = vadd.f32 %v1392, %v1412
      %v1421 = vadd.f32 %v1393, %v1413
      %v1422 = vadd.f32 %v1394, %v1414
      %v1423 = vadd.f32 %v1395, %v1415
      %v1424 = vld [vmem:[%s271 + $0x5] sm:$0xff]
      %v1425 = vld [vmem:[%s271 + $0x15] sm:$0xff]
      %v1426 = vld [vmem:[%s271 + $0x25] sm:$0xff]
      %v1427 = vld [vmem:[%s271 + $0x35] sm:$0xff]
      %v1428 = vld [vmem:[%s271 + $0x45] sm:$0xff]
      %v1429 = vld [vmem:[%s271 + $0x55] sm:$0xff]
      %v1430 = vld [vmem:[%s271 + $0x65] sm:$0xff]
      %v1431 = vld [vmem:[%s271 + $0x75] sm:$0xff]
      %v1432 = vlaneseq
      %v1433 = vshrl.u32 %v1432, 7
      %v1434 = vsub.s32 5, %v1433
      %v1435 = vrot.slane %v293, %v1434
      %v1436 = vmul.f32 %v1424, %v1435
      %v1437 = vmul.f32 %v1425, %v1435
      %v1438 = vmul.f32 %v1426, %v1435
      %v1439 = vmul.f32 %v1427, %v1435
      %v1440 = vmul.f32 %v1428, %v1435
      %v1441 = vmul.f32 %v1429, %v1435
      %v1442 = vmul.f32 %v1430, %v1435
      %v1443 = vmul.f32 %v1431, %v1435
      %v1444 = vadd.f32 %v1416, %v1436
      %v1445 = vadd.f32 %v1417, %v1437
      %v1446 = vadd.f32 %v1418, %v1438
      %v1447 = vadd.f32 %v1419, %v1439
      %v1448 = vadd.f32 %v1420, %v1440
      %v1449 = vadd.f32 %v1421, %v1441
      %v1450 = vadd.f32 %v1422, %v1442
      %v1451 = vadd.f32 %v1423, %v1443
      %v1452 = vld [vmem:[%s271 + $0x6] sm:$0xff]
      %v1453 = vld [vmem:[%s271 + $0x16] sm:$0xff]
      %v1454 = vld [vmem:[%s271 + $0x26] sm:$0xff]
      %v1455 = vld [vmem:[%s271 + $0x36] sm:$0xff]
      %v1456 = vld [vmem:[%s271 + $0x46] sm:$0xff]
      %v1457 = vld [vmem:[%s271 + $0x56] sm:$0xff]
      %v1458 = vld [vmem:[%s271 + $0x66] sm:$0xff]
      %v1459 = vld [vmem:[%s271 + $0x76] sm:$0xff]
      %v1460 = vlaneseq
      %v1461 = vshrl.u32 %v1460, 7
      %v1462 = vsub.s32 6, %v1461
      %v1463 = vrot.slane %v293, %v1462
      %v1464 = vmul.f32 %v1452, %v1463
      %v1465 = vmul.f32 %v1453, %v1463
      %v1466 = vmul.f32 %v1454, %v1463
      %v1467 = vmul.f32 %v1455, %v1463
      %v1468 = vmul.f32 %v1456, %v1463
      %v1469 = vmul.f32 %v1457, %v1463
      %v1470 = vmul.f32 %v1458, %v1463
      %v1471 = vmul.f32 %v1459, %v1463
      %v1472 = vadd.f32 %v1444, %v1464
      %v1473 = vadd.f32 %v1445, %v1465
      %v1474 = vadd.f32 %v1446, %v1466
      %v1475 = vadd.f32 %v1447, %v1467
      %v1476 = vadd.f32 %v1448, %v1468
      %v1477 = vadd.f32 %v1449, %v1469
      %v1478 = vadd.f32 %v1450, %v1470
      %v1479 = vadd.f32 %v1451, %v1471
      %v1480 = vld [vmem:[%s274] sm:$0xff]
      %v1481 = vld [vmem:[%s274 + $0x10] sm:$0xff]
      %v1482 = vld [vmem:[%s274 + $0x20] sm:$0xff]
      %v1483 = vld [vmem:[%s274 + $0x30] sm:$0xff]
      %v1484 = vld [vmem:[%s274 + $0x40] sm:$0xff]
      %v1485 = vld [vmem:[%s274 + $0x50] sm:$0xff]
      %v1486 = vld [vmem:[%s274 + $0x60] sm:$0xff]
      %v1487 = vld [vmem:[%s274 + $0x70] sm:$0xff]
      %v1488 = vlaneseq
      %v1489 = vshrl.u32 %v1488, 7
      %v1490 = vsub.s32 0, %v1489
      %v1491 = vrot.slane %v294, %v1490
      %v1492 = vmul.f32 %v1480, %v1491
      %v1493 = vmul.f32 %v1481, %v1491
      %v1494 = vmul.f32 %v1482, %v1491
      %v1495 = vmul.f32 %v1483, %v1491
      %v1496 = vmul.f32 %v1484, %v1491
      %v1497 = vmul.f32 %v1485, %v1491
      %v1498 = vmul.f32 %v1486, %v1491
      %v1499 = vmul.f32 %v1487, %v1491
      %v1500 = vadd.f32 %v1472, %v1492
      %v1501 = vadd.f32 %v1473, %v1493
      %v1502 = vadd.f32 %v1474, %v1494
      %v1503 = vadd.f32 %v1475, %v1495
      %v1504 = vadd.f32 %v1476, %v1496
      %v1505 = vadd.f32 %v1477, %v1497
      %v1506 = vadd.f32 %v1478, %v1498
      %v1507 = vadd.f32 %v1479, %v1499
      %v1508 = vld [vmem:[%s274 + $0x1] sm:$0xff]
      %v1509 = vld [vmem:[%s274 + $0x11] sm:$0xff]
      %v1510 = vld [vmem:[%s274 + $0x21] sm:$0xff]
      %v1511 = vld [vmem:[%s274 + $0x31] sm:$0xff]
      %v1512 = vld [vmem:[%s274 + $0x41] sm:$0xff]
      %v1513 = vld [vmem:[%s274 + $0x51] sm:$0xff]
      %v1514 = vld [vmem:[%s274 + $0x61] sm:$0xff]
      %v1515 = vld [vmem:[%s274 + $0x71] sm:$0xff]
      %v1516 = vlaneseq
      %v1517 = vshrl.u32 %v1516, 7
      %v1518 = vsub.s32 1, %v1517
      %v1519 = vrot.slane %v294, %v1518
      %v1520 = vmul.f32 %v1508, %v1519
      %v1521 = vmul.f32 %v1509, %v1519
      %v1522 = vmul.f32 %v1510, %v1519
      %v1523 = vmul.f32 %v1511, %v1519
      %v1524 = vmul.f32 %v1512, %v1519
      %v1525 = vmul.f32 %v1513, %v1519
      %v1526 = vmul.f32 %v1514, %v1519
      %v1527 = vmul.f32 %v1515, %v1519
      %v1528 = vadd.f32 %v1500, %v1520
      %v1529 = vadd.f32 %v1501, %v1521
      %v1530 = vadd.f32 %v1502, %v1522
      %v1531 = vadd.f32 %v1503, %v1523
      %v1532 = vadd.f32 %v1504, %v1524
      %v1533 = vadd.f32 %v1505, %v1525
      %v1534 = vadd.f32 %v1506, %v1526
      %v1535 = vadd.f32 %v1507, %v1527
      %v1536 = vld [vmem:[%s274 + $0x2] sm:$0xff]
      %v1537 = vld [vmem:[%s274 + $0x12] sm:$0xff]
      %v1538 = vld [vmem:[%s274 + $0x22] sm:$0xff]
      %v1539 = vld [vmem:[%s274 + $0x32] sm:$0xff]
      %v1540 = vld [vmem:[%s274 + $0x42] sm:$0xff]
      %v1541 = vld [vmem:[%s274 + $0x52] sm:$0xff]
      %v1542 = vld [vmem:[%s274 + $0x62] sm:$0xff]
      %v1543 = vld [vmem:[%s274 + $0x72] sm:$0xff]
      %v1544 = vlaneseq
      %v1545 = vshrl.u32 %v1544, 7
      %v1546 = vsub.s32 2, %v1545
      %v1547 = vrot.slane %v294, %v1546
      %v1548 = vmul.f32 %v1536, %v1547
      %v1549 = vmul.f32 %v1537, %v1547
      %v1550 = vmul.f32 %v1538, %v1547
      %v1551 = vmul.f32 %v1539, %v1547
      %v1552 = vmul.f32 %v1540, %v1547
      %v1553 = vmul.f32 %v1541, %v1547
      %v1554 = vmul.f32 %v1542, %v1547
      %v1555 = vmul.f32 %v1543, %v1547
      %v1556 = vadd.f32 %v1528, %v1548
      %v1557 = vadd.f32 %v1529, %v1549
      %v1558 = vadd.f32 %v1530, %v1550
      %v1559 = vadd.f32 %v1531, %v1551
      %v1560 = vadd.f32 %v1532, %v1552
      %v1561 = vadd.f32 %v1533, %v1553
      %v1562 = vadd.f32 %v1534, %v1554
      %v1563 = vadd.f32 %v1535, %v1555
      %v1564 = vld [vmem:[%s274 + $0x3] sm:$0xff]
      %v1565 = vld [vmem:[%s274 + $0x13] sm:$0xff]
      %v1566 = vld [vmem:[%s274 + $0x23] sm:$0xff]
      %v1567 = vld [vmem:[%s274 + $0x33] sm:$0xff]
      %v1568 = vld [vmem:[%s274 + $0x43] sm:$0xff]
      %v1569 = vld [vmem:[%s274 + $0x53] sm:$0xff]
      %v1570 = vld [vmem:[%s274 + $0x63] sm:$0xff]
      %v1571 = vld [vmem:[%s274 + $0x73] sm:$0xff]
      %v1572 = vlaneseq
      %v1573 = vshrl.u32 %v1572, 7
      %v1574 = vsub.s32 3, %v1573
      %v1575 = vrot.slane %v294, %v1574
      %v1576 = vmul.f32 %v1564, %v1575
      %v1577 = vmul.f32 %v1565, %v1575
      %v1578 = vmul.f32 %v1566, %v1575
      %v1579 = vmul.f32 %v1567, %v1575
      %v1580 = vmul.f32 %v1568, %v1575
      %v1581 = vmul.f32 %v1569, %v1575
      %v1582 = vmul.f32 %v1570, %v1575
      %v1583 = vmul.f32 %v1571, %v1575
      %v1584 = vadd.f32 %v1556, %v1576
      %v1585 = vadd.f32 %v1557, %v1577
      %v1586 = vadd.f32 %v1558, %v1578
      %v1587 = vadd.f32 %v1559, %v1579
      %v1588 = vadd.f32 %v1560, %v1580
      %v1589 = vadd.f32 %v1561, %v1581
      %v1590 = vadd.f32 %v1562, %v1582
      %v1591 = vadd.f32 %v1563, %v1583
      %v1592 = vld [vmem:[%s274 + $0x4] sm:$0xff]
      %v1593 = vld [vmem:[%s274 + $0x14] sm:$0xff]
      %v1594 = vld [vmem:[%s274 + $0x24] sm:$0xff]
      %v1595 = vld [vmem:[%s274 + $0x34] sm:$0xff]
      %v1596 = vld [vmem:[%s274 + $0x44] sm:$0xff]
      %v1597 = vld [vmem:[%s274 + $0x54] sm:$0xff]
      %v1598 = vld [vmem:[%s274 + $0x64] sm:$0xff]
      %v1599 = vld [vmem:[%s274 + $0x74] sm:$0xff]
      %v1600 = vlaneseq
      %v1601 = vshrl.u32 %v1600, 7
      %v1602 = vsub.s32 4, %v1601
      %v1603 = vrot.slane %v294, %v1602
      %v1604 = vmul.f32 %v1592, %v1603
      %v1605 = vmul.f32 %v1593, %v1603
      %v1606 = vmul.f32 %v1594, %v1603
      %v1607 = vmul.f32 %v1595, %v1603
      %v1608 = vmul.f32 %v1596, %v1603
      %v1609 = vmul.f32 %v1597, %v1603
      %v1610 = vmul.f32 %v1598, %v1603
      %v1611 = vmul.f32 %v1599, %v1603
      %v1612 = vadd.f32 %v1584, %v1604
      %v1613 = vadd.f32 %v1585, %v1605
      %v1614 = vadd.f32 %v1586, %v1606
      %v1615 = vadd.f32 %v1587, %v1607
      %v1616 = vadd.f32 %v1588, %v1608
      %v1617 = vadd.f32 %v1589, %v1609
      %v1618 = vadd.f32 %v1590, %v1610
      %v1619 = vadd.f32 %v1591, %v1611
      %v1620 = vld [vmem:[%s274 + $0x5] sm:$0xff]
      %v1621 = vld [vmem:[%s274 + $0x15] sm:$0xff]
      %v1622 = vld [vmem:[%s274 + $0x25] sm:$0xff]
      %v1623 = vld [vmem:[%s274 + $0x35] sm:$0xff]
      %v1624 = vld [vmem:[%s274 + $0x45] sm:$0xff]
      %v1625 = vld [vmem:[%s274 + $0x55] sm:$0xff]
      %v1626 = vld [vmem:[%s274 + $0x65] sm:$0xff]
      %v1627 = vld [vmem:[%s274 + $0x75] sm:$0xff]
      %v1628 = vlaneseq
      %v1629 = vshrl.u32 %v1628, 7
      %v1630 = vsub.s32 5, %v1629
      %v1631 = vrot.slane %v294, %v1630
      %v1632 = vmul.f32 %v1620, %v1631
      %v1633 = vmul.f32 %v1621, %v1631
      %v1634 = vmul.f32 %v1622, %v1631
      %v1635 = vmul.f32 %v1623, %v1631
      %v1636 = vmul.f32 %v1624, %v1631
      %v1637 = vmul.f32 %v1625, %v1631
      %v1638 = vmul.f32 %v1626, %v1631
      %v1639 = vmul.f32 %v1627, %v1631
      %v1640 = vadd.f32 %v1612, %v1632
      %v1641 = vadd.f32 %v1613, %v1633
      %v1642 = vadd.f32 %v1614, %v1634
      %v1643 = vadd.f32 %v1615, %v1635
      %v1644 = vadd.f32 %v1616, %v1636
      %v1645 = vadd.f32 %v1617, %v1637
      %v1646 = vadd.f32 %v1618, %v1638
      %v1647 = vadd.f32 %v1619, %v1639
      %v1648 = vld [vmem:[%s274 + $0x6] sm:$0xff]
      %v1649 = vld [vmem:[%s274 + $0x16] sm:$0xff]
      %v1650 = vld [vmem:[%s274 + $0x26] sm:$0xff]
      %v1651 = vld [vmem:[%s274 + $0x36] sm:$0xff]
      %v1652 = vld [vmem:[%s274 + $0x46] sm:$0xff]
      %v1653 = vld [vmem:[%s274 + $0x56] sm:$0xff]
      %v1654 = vld [vmem:[%s274 + $0x66] sm:$0xff]
      %v1655 = vld [vmem:[%s274 + $0x76] sm:$0xff]
      %v1656 = vlaneseq
      %v1657 = vshrl.u32 %v1656, 7
      %v1658 = vsub.s32 6, %v1657
      %v1659 = vrot.slane %v294, %v1658
      %v1660 = vmul.f32 %v1648, %v1659
      %v1661 = vmul.f32 %v1649, %v1659
      %v1662 = vmul.f32 %v1650, %v1659
      %v1663 = vmul.f32 %v1651, %v1659
      %v1664 = vmul.f32 %v1652, %v1659
      %v1665 = vmul.f32 %v1653, %v1659
      %v1666 = vmul.f32 %v1654, %v1659
      %v1667 = vmul.f32 %v1655, %v1659
      %v1668 = vadd.f32 %v1640, %v1660
      %v1669 = vadd.f32 %v1641, %v1661
      %v1670 = vadd.f32 %v1642, %v1662
      %v1671 = vadd.f32 %v1643, %v1663
      %v1672 = vadd.f32 %v1644, %v1664
      %v1673 = vadd.f32 %v1645, %v1665
      %v1674 = vadd.f32 %v1646, %v1666
      %v1675 = vadd.f32 %v1647, %v1667
      %1676 = vst [vmem:[%s232 + $0x1] sm:$0xff] %v1668
      %1677 = vst [vmem:[%s232 + $0x9] sm:$0xff] %v1669
      %1678 = vst [vmem:[%s232 + $0x11] sm:$0xff] %v1670
      %1679 = vst [vmem:[%s232 + $0x19] sm:$0xff] %v1671
      %1680 = vst [vmem:[%s232 + $0x21] sm:$0xff] %v1672
      %1681 = vst [vmem:[%s232 + $0x29] sm:$0xff] %v1673
      %1682 = vst [vmem:[%s232 + $0x31] sm:$0xff] %v1674
      %1683 = vst [vmem:[%s232 + $0x39] sm:$0xff] %v1675
      %p1684 = scmp.lt.s32.totalorder %s18, 1
      %s1685 = scalar_select %p1684, %s18, 1
      %p1686 = scmp.lt.s32.totalorder %s19, 0
      %s1687 = scalar_select %p1686, %s19, 0
      %s1688 = smul.addr %s1685, 9
      %s1689 = sadd.s32 %s1687, %s1688
      %s1690 = smul.addr %s1689, 8
      %s1691 = scalar_lea.vmem %s3, %s1690
      // Predicated region
      $region33: #{tpu_custom_call.1} parent=31 // pred_check
        %p1692 = pneg %p126
      $region34: #{tpu_custom_call.1} parent=31 // pred_check_branch
        %1694 = sbr.rel (%p1692) target = $region36
      $region35: #{tpu_custom_call.1} parent=31 // pred_region
        _
      $region36: #{tpu_custom_call.1} parent=31 // pred_fallthru
        _
    $region32: #{tpu_custom_call.1} parent=5 // pred_fallthru
      _
    %p1695 = scmp.le.s32.totalorder 2, %s9
    // Predicated region
    $region37: #{tpu_custom_call.1} parent=5 // pred_check
      %p1696 = pneg %p1695
    $region38: #{tpu_custom_call.1} parent=5 // pred_check_branch
      %1698 = sbr.rel (%p1696) target = $region40
    $region39: #{tpu_custom_call.1} parent=5 // pred_region
      %s1699 = ssub.s32 %s9, 2
      // Predicated region
      $region41: #{tpu_custom_call.1} parent=39 // pred_check
        %p1700 = pneg %p132
      $region42: #{tpu_custom_call.1} parent=39 // pred_check_branch
        %1702 = sbr.rel (%p1700) target = $region44
      $region43: #{tpu_custom_call.1} parent=39 // pred_region
        %p1703 = scmp.lt.s32.totalorder %s20, 1
        %s1704 = scalar_select %p1703, %s20, 1
        %p1705 = scmp.lt.s32.totalorder %s21, 0
        %s1706 = scalar_select %p1705, %s21, 0
        %s1707 = smul.addr %s1704, 9
        %s1708 = sadd.s32 %s1706, %s1707
        %s1709 = smul.addr %s1708, 8
        %s1710 = scalar_lea.vmem %s3, %s1709
      $region44: #{tpu_custom_call.1} parent=39 // pred_fallthru
        _
    $region40: #{tpu_custom_call.1} parent=5 // pred_fallthru
      _
  $region6: #{tpu_custom_call.1} parent=0 // loop_footer
    %s13 = sadd.s32 1, %s9
  $region7: #{tpu_custom_call.1} parent=0 // loop_footer_branch
    %8 = sbr.rel target = $region3
  $region8: #{tpu_custom_call.1} parent=0 // loop_exit
    _

</llo_original>
